<compile_context>
chip_gen: v5e
topology: v5e:2x2
jax: 0.10.0
libtpu: 0.0.40
codegen_flags: <defaults>
</compile_context>

<pallas_src>
import functools

import jax
import jax.numpy as jnp
import numpy as np
from jax.experimental import pallas as pl
from jax.experimental.pallas import tpu as pltpu


COMPUTE_DTYPE = jnp.float32   # set to jnp.bfloat16 for 2x MXU (looser parity)


def _round_up(n, m):
    return ((n + m - 1) // m) * m


# ----------------------------- Pallas kernels ------------------------------ #

def _linear_kernel(x_ref, w_ref, b_ref, o_ref):
    """One row-tile of y = x @ W + b."""
    o_ref[...] = (
        jnp.dot(x_ref[...], w_ref[...], preferred_element_type=jnp.float32)
        + b_ref[...]
    ).astype(o_ref.dtype)


def linear_pallas(x2d, w, b, *, tile_m=256, compute_dtype=COMPUTE_DTYPE):
    """x2d: (N, K); w: (K, M); b: (1, M) -> (N, M) float32. Row-tiled matmul."""
    N, K = x2d.shape
    M = w.shape[1]
    tm = min(tile_m, _round_up(N, 8))
    Np = _round_up(N, tm)
    if Np != N:
        x2d = jnp.pad(x2d, ((0, Np - N), (0, 0)))
    out = pl.pallas_call(
        _linear_kernel,
        out_shape=jax.ShapeDtypeStruct((Np, M), jnp.float32),
        grid_spec=pltpu.PrefetchScalarGridSpec(
            num_scalar_prefetch=0,
            grid=(Np // tm,),
            in_specs=[
                pl.BlockSpec((tm, K), lambda i: (i, 0)),
                pl.BlockSpec((K, M), lambda i: (0, 0)),   # weight resident
                pl.BlockSpec((1, M), lambda i: (0, 0)),   # bias resident
            ],
            out_specs=pl.BlockSpec((tm, M), lambda i: (i, 0)),
        ),
        compiler_params=pltpu.CompilerParams(
            dimension_semantics=("parallel",)),
    )(x2d.astype(compute_dtype), w.astype(compute_dtype), b)
    return out[:N] if Np != N else out


def _lstm_recurrence_kernel(xproj_ref, whh_ref, out_ref, h_scr, c_scr,
                            *, hidden, t_chunk):
    """Recurrence over one time chunk.  xproj already holds x@W_ih + bias.

    h/c persist across chunks in VMEM scratch; the per-step loop is a static
    Python loop (fully unrolled, chunk length is bounded by the grid)."""
    chunk = pl.program_id(0)

    @pl.when(chunk == 0)
    def _():
        h_scr[...] = jnp.zeros_like(h_scr)
        c_scr[...] = jnp.zeros_like(c_scr)

    whh = whh_ref[...]          # (H, 4H) — loaded once per chunk, stays in vregs
    cd = whh.dtype

    h = h_scr[...]
    c = c_scr[...]
    for t in range(t_chunk):    # static unroll; only h@W_hh is serial work
        gates = xproj_ref[t] + jnp.dot(
            h.astype(cd), whh, preferred_element_type=jnp.float32)  # (B, 4H)
        i_g = jax.nn.sigmoid(gates[:, 0 * hidden:1 * hidden])
        f_g = jax.nn.sigmoid(gates[:, 1 * hidden:2 * hidden])
        g_g = jnp.tanh(gates[:, 2 * hidden:3 * hidden])
        o_g = jax.nn.sigmoid(gates[:, 3 * hidden:4 * hidden])
        c = f_g * c + i_g * g_g
        h = o_g * jnp.tanh(c)
        out_ref[t] = h          # VMEM store; HBM writeback once per chunk
    h_scr[...] = h
    c_scr[...] = c


def lstm_layer_pallas(x_tm, w_ih, w_hh, b, *, t_chunk=32,
                      compute_dtype=COMPUTE_DTYPE):
    """One LSTM layer.  x_tm: (T, B, D); w_ih: (D, 4H); w_hh: (H, 4H);
    b: (1, 4H) = b_ih + b_hh.  Returns (T, B, H) float32."""
    T, B, D = x_tm.shape
    H = w_hh.shape[0]

    # (1) Hoisted input projection: one big MXU matmul for all timesteps.
    xproj = linear_pallas(x_tm.reshape(T * B, D), w_ih, b,
                          compute_dtype=compute_dtype)          # (T*B, 4H)
    xproj = xproj.reshape(T, B, 4 * H)

    # (2) Sequential recurrence, chunked over time via the grid.
    tc = min(t_chunk, T)
    Tp = _round_up(T, tc)
    if Tp != T:                 # padded steps trail the real ones -> discarded
        xproj = jnp.pad(xproj, ((0, Tp - T), (0, 0), (0, 0)))

    kernel = functools.partial(_lstm_recurrence_kernel, hidden=H, t_chunk=tc)
    out = pl.pallas_call(
        kernel,
        out_shape=jax.ShapeDtypeStruct((Tp, B, H), jnp.float32),
        grid_spec=pltpu.PrefetchScalarGridSpec(
            num_scalar_prefetch=0,
            grid=(Tp // tc,),
            in_specs=[
                pl.BlockSpec((tc, B, 4 * H), lambda c: (c, 0, 0)),
                pl.BlockSpec((H, 4 * H), lambda c: (0, 0)),     # W_hh resident
            ],
            out_specs=pl.BlockSpec((tc, B, H), lambda c: (c, 0, 0)),
            scratch_shapes=[pltpu.VMEM((B, H), jnp.float32),    # h state
                            pltpu.VMEM((B, H), jnp.float32)],   # c state
        ),
        compiler_params=pltpu.CompilerParams(
            dimension_semantics=("arbitrary",)),                # serial in time
    )(xproj, w_hh.astype(compute_dtype))
    return out[:T] if Tp != T else out


def _fusion_kernel(main_ref, aux_ref, wm_ref, wa_ref, b_ref, o_ref):
    """Linear over concat([main, aux]) = main @ Wm + aux @ Wa + b."""
    o_ref[...] = (
        jnp.dot(main_ref[...], wm_ref[...], preferred_element_type=jnp.float32)
        + jnp.dot(aux_ref[...], wa_ref[...], preferred_element_type=jnp.float32)
        + b_ref[...]
    ).astype(o_ref.dtype)


def fusion_pallas(main2d, aux2d, w_main, w_aux, b, *, tile_m=256,
                  compute_dtype=COMPUTE_DTYPE):
    N, Hm = main2d.shape
    Ha = aux2d.shape[1]
    Ho = w_main.shape[1]
    tm = min(tile_m, _round_up(N, 8))
    Np = _round_up(N, tm)
    if Np != N:
        main2d = jnp.pad(main2d, ((0, Np - N), (0, 0)))
        aux2d = jnp.pad(aux2d, ((0, Np - N), (0, 0)))
    out = pl.pallas_call(
        _fusion_kernel,
        out_shape=jax.ShapeDtypeStruct((Np, Ho), jnp.float32),
        grid_spec=pltpu.PrefetchScalarGridSpec(
            num_scalar_prefetch=0,
            grid=(Np // tm,),
            in_specs=[
                pl.BlockSpec((tm, Hm), lambda i: (i, 0)),
                pl.BlockSpec((tm, Ha), lambda i: (i, 0)),
                pl.BlockSpec((Hm, Ho), lambda i: (0, 0)),
                pl.BlockSpec((Ha, Ho), lambda i: (0, 0)),
                pl.BlockSpec((1, Ho), lambda i: (0, 0)),
            ],
            out_specs=pl.BlockSpec((tm, Ho), lambda i: (i, 0)),
        ),
        compiler_params=pltpu.CompilerParams(
            dimension_semantics=("parallel",)),
    )(main2d.astype(compute_dtype), aux2d.astype(compute_dtype),
      w_main.astype(compute_dtype), w_aux.astype(compute_dtype), b)
    return out[:N] if Np != N else out


# ------------------------------- JAX glue ---------------------------------- #

def avgpool1d_time(x):
    """AvgPool1d(kernel=3, stride=2, padding=1, count_include_pad=True) over time.
    x: (B, T, D) -> (B, T_out, D)."""
    B, T, D = x.shape
    T_out = (T + 2 * 1 - 3) // 2 + 1
    xp = jnp.pad(x, ((0, 0), (1, 1), (0, 0)))
    idx = jnp.arange(T_out)[:, None] * 2 + jnp.arange(3)[None, :]  # (T_out, 3)
    windows = xp[:, idx, :]                                        # (B, T_out, 3, D)
    return jnp.mean(windows, axis=2)


def linear_interp_time(y, out_len):
    """F.interpolate(mode='linear', align_corners=True) along time
    (align_corners=True is explicit in the PyTorch module).
    y: (B, T_in, C) -> (B, out_len, C)."""
    B, T_in, C = y.shape
    if T_in == 1:
        return jnp.broadcast_to(y, (B, out_len, C))
    pos = jnp.arange(out_len, dtype=jnp.float32) * (T_in - 1) / (out_len - 1)
    lo = jnp.clip(jnp.floor(pos).astype(jnp.int32), 0, T_in - 2)
    frac = pos - lo.astype(jnp.float32)
    y_lo = y[:, lo, :]
    y_hi = y[:, lo + 1, :]
    return y_lo * (1.0 - frac)[None, :, None] + y_hi * frac[None, :, None]


# ---------------------------- model definition ----------------------------- #

def init_params(key, input_size, hidden_size, num_layers):
    """Deterministic params matching PyTorch shapes (stored pre-transposed)."""
    params = {"main": [], "aux": None, "fusion": None}
    k = key

    def uniform(k, shape, bound):
        return jax.random.uniform(k, shape, jnp.float32, -bound, bound)

    # lstm_main: num_layers layers of hidden_size
    bound_m = 1.0 / np.sqrt(hidden_size)
    in_sz = input_size
    for _ in range(num_layers):
        k, k1, k2, k3, k4 = jax.random.split(k, 5)
        w_ih = uniform(k1, (in_sz, 4 * hidden_size), bound_m)          # = W_ih^T
        w_hh = uniform(k2, (hidden_size, 4 * hidden_size), bound_m)    # = W_hh^T
        b = (uniform(k3, (1, 4 * hidden_size), bound_m)
             + uniform(k4, (1, 4 * hidden_size), bound_m))             # b_ih + b_hh
        params["main"].append((w_ih, w_hh, b))
        in_sz = hidden_size

    # lstm_aux: 1 layer of hidden_size // 2
    h_aux = hidden_size // 2
    bound_a = 1.0 / np.sqrt(h_aux)
    k, k1, k2, k3, k4 = jax.random.split(k, 5)
    params["aux"] = (uniform(k1, (input_size, 4 * h_aux), bound_a),
                     uniform(k2, (h_aux, 4 * h_aux), bound_a),
                     uniform(k3, (1, 4 * h_aux), bound_a)
                     + uniform(k4, (1, 4 * h_aux), bound_a))

    # fusion Linear(hidden + hidden//2 -> hidden); split weight: [W_main | W_aux]
    in_f = hidden_size + h_aux
    bound_f = 1.0 / np.sqrt(in_f)
    k, k1, k2 = jax.random.split(k, 3)
    w_f = uniform(k1, (in_f, hidden_size), bound_f)                    # = W^T
    b_f = uniform(k2, (1, hidden_size), bound_f)
    params["fusion"] = (w_f[:hidden_size, :], w_f[hidden_size:, :], b_f)
    return params


def multiscale_lstm_forward(params, x):
    """x: (B, T, input_size) -> (B, T, hidden_size). Inference (dropout off)."""
    B, T, _ = x.shape
    xf = x.astype(jnp.float32)

    # main LSTM stack (time-major for the kernels)
    # TODO(synk): inter-layer dropout of nn.LSTM(training) not applied (eval semantics).
    h = jnp.transpose(xf, (1, 0, 2))                       # (T, B, D)
    for (w_ih, w_hh, b) in params["main"]:
        h = lstm_layer_pallas(h, w_ih, w_hh, b)            # (T, B, H)
    out_main = jnp.transpose(h, (1, 0, 2))                 # (B, T, H)

    # downsample along time, aux LSTM, upsample back
    x_ds = avgpool1d_time(xf)                              # (B, T_ds, D)
    w_ih_a, w_hh_a, b_a = params["aux"]
    h_aux = lstm_layer_pallas(jnp.transpose(x_ds, (1, 0, 2)), w_ih_a, w_hh_a, b_a)
    out_aux = jnp.transpose(h_aux, (1, 0, 2))              # (B, T_ds, H/2)
    out_aux = linear_interp_time(out_aux, T)               # (B, T, H/2)

    # fusion linear over concat([out_main, out_aux]) (concat folded into 2 matmuls)
    w_main, w_aux, b_f = params["fusion"]
    H = w_main.shape[1]
    fused = fusion_pallas(out_main.reshape(B * T, -1),
                          out_aux.reshape(B * T, -1),
                          w_main, w_aux, b_f)
    return fused.reshape(B, T, H)


# ------------------------------ pure-JAX ref -------------------------------- #

def _lstm_layer_ref(x_tm, w_ih, w_hh, b):
    T, B, _ = x_tm.shape
    H = w_hh.shape[0]

    def step(carry, x_t):
        h, c = carry
        g = x_t @ w_ih + h @ w_hh + b
        i = jax.nn.sigmoid(g[:, :H])
        f = jax.nn.sigmoid(g[:, H:2 * H])
        gg = jnp.tanh(g[:, 2 * H:3 * H])
        o = jax.nn.sigmoid(g[:, 3 * H:])
        c = f * c + i * gg
        h = o * jnp.tanh(c)
        return (h, c), h

    init = (jnp.zeros((B, H), jnp.float32), jnp.zeros((B, H), jnp.float32))
    _, hs = jax.lax.scan(step, init, x_tm)
    return hs


def multiscale_lstm_ref(params, x):
    B, T, _ = x.shape
    h = jnp.transpose(x, (1, 0, 2)).astype(jnp.float32)
    for (w_ih, w_hh, b) in params["main"]:
        h = _lstm_layer_ref(h, w_ih, w_hh, b)
    out_main = jnp.transpose(h, (1, 0, 2))
    x_ds = avgpool1d_time(x.astype(jnp.float32))
    w_ih_a, w_hh_a, b_a = params["aux"]
    out_aux = jnp.transpose(_lstm_layer_ref(jnp.transpose(x_ds, (1, 0, 2)),
                                            w_ih_a, w_hh_a, b_a), (1, 0, 2))
    out_aux = linear_interp_time(out_aux, T)
    w_main, w_aux, b_f = params["fusion"]
    return (out_main @ w_main + out_aux @ w_aux + b_f)


# ---------------------------------- main ------------------------------------ #

if __name__ == "__main__":
    input_size, hidden_size, num_layers, dropout_rate = 4, 32, 2, 0.1
    B, T = 2, 8

    key = jax.random.PRNGKey(0)
    k_p, k_x = jax.random.split(key)
    params = init_params(k_p, input_size, hidden_size, num_layers)
    x = jax.random.normal(k_x, (B, T, input_size), jnp.float32)

    out = jax.jit(multiscale_lstm_forward)(params, x)
    out = jax.block_until_ready(out)

    ref = multiscale_lstm_ref(params, x)
    assert out.shape == (B, T, hidden_size), out.shape
    np.testing.assert_allclose(np.asarray(out), np.asarray(ref),
                               rtol=1e-4, atol=1e-4)
    print("KERNEL_OK")
</pallas_src>

<mosaic_0001>
module attributes {stable_mosaic.version = 11 : i64} {
  func.func @_linear_kernel(%arg0: i32, %arg1: memref<8x4xf32, #tpu.memory_space<vmem>>, %arg2: memref<4x64xf32, #tpu.memory_space<vmem>>, %arg3: memref<1x64xf32, #tpu.memory_space<vmem>>, %arg4: memref<8x64xf32, #tpu.memory_space<vmem>>) attributes {dimension_semantics = [#tpu.dimension_semantics<parallel>], iteration_bounds = array<i64: 1>, scalar_prefetch = 0 : i64, scratch_operands = 0 : i64, tpu.core_type = #tpu.core_type<tc>, window_params = [{transform_indices = @transform_0, window_bounds = array<i64: 8, 4>}, {pipeline_mode = #tpu.pipeline_mode<synchronous>, transform_indices = @transform_1, window_bounds = array<i64: 4, 64>}, {pipeline_mode = #tpu.pipeline_mode<synchronous>, transform_indices = @transform_2, window_bounds = array<i64: 1, 64>}, {transform_indices = @transform_3, window_bounds = array<i64: 8, 64>}]} {
    %c0 = arith.constant 0 : index
    %c0_0 = arith.constant 0 : index
    %0 = vector.load %arg1[%c0, %c0_0] : memref<8x4xf32, #tpu.memory_space<vmem>>, vector<8x4xf32>
    %c0_1 = arith.constant 0 : index
    %c0_2 = arith.constant 0 : index
    %1 = vector.load %arg2[%c0_1, %c0_2] : memref<4x64xf32, #tpu.memory_space<vmem>>, vector<4x64xf32>
    %cst = arith.constant dense<0.000000e+00> : vector<8x64xf32>
    %2 = tpu.matmul %0, %1, %cst {dimension_numbers = #tpu.dot_dimension_numbers<[1], [0], [0], [1], [0, 0, 1, 1], [], []>} : vector<8x4xf32>, vector<4x64xf32>, vector<8x64xf32> -> vector<8x64xf32>
    %c0_3 = arith.constant 0 : index
    %c0_4 = arith.constant 0 : index
    %3 = vector.load %arg3[%c0_3, %c0_4] : memref<1x64xf32, #tpu.memory_space<vmem>>, vector<1x64xf32>
    %4 = vector.broadcast %3 : vector<1x64xf32> to vector<8x64xf32>
    %5 = arith.addf %2, %4 : vector<8x64xf32>
    %c0_5 = arith.constant 0 : index
    %c0_6 = arith.constant 0 : index
    %6 = vector.load %arg4[%c0_5, %c0_6] : memref<8x64xf32, #tpu.memory_space<vmem>>, vector<8x64xf32>
    tpu.vector_store %arg4[%c0_5, %c0_6], %5 {strides = array<i32>} : memref<8x64xf32, #tpu.memory_space<vmem>>, vector<8x64xf32>,
    return
  }
  func.func @transform_0(%arg0: i32) -> (i32, i32) {
    %c0_i32 = arith.constant 0 : i32
    %c0_i32_0 = arith.constant 0 : i32
    return %arg0, %c0_i32 : i32, i32
  }
  func.func @transform_1(%arg0: i32) -> (i32, i32) {
    %c0_i32 = arith.constant 0 : i32
    %c0_i32_0 = arith.constant 0 : i32
    %c0_i32_1 = arith.constant 0 : i32
    return %c0_i32, %c0_i32_0 : i32, i32
  }
  func.func @transform_2(%arg0: i32) -> (i32, i32) {
    %c0_i32 = arith.constant 0 : i32
    %c0_i32_0 = arith.constant 0 : i32
    %c0_i32_1 = arith.constant 0 : i32
    return %c0_i32, %c0_i32_0 : i32, i32
  }
  func.func @transform_3(%arg0: i32) -> (i32, i32) {
    %c0_i32 = arith.constant 0 : i32
    %c0_i32_0 = arith.constant 0 : i32
    return %arg0, %c0_i32 : i32, i32
  }
}

module attributes {stable_mosaic.version = 11 : i64} {
  func.func @_lstm_recurrence_kernel(%arg0: i32, %arg1: memref<4x2x64xf32, #tpu.memory_space<vmem>>, %arg2: memref<16x64xf32, #tpu.memory_space<vmem>>, %arg3: memref<4x2x16xf32, #tpu.memory_space<vmem>>, %arg4: memref<2x16xf32, #tpu.memory_space<vmem>>, %arg5: memref<2x16xf32, #tpu.memory_space<vmem>>) attributes {dimension_semantics = [#tpu.dimension_semantics<arbitrary>], iteration_bounds = array<i64: 1>, scalar_prefetch = 0 : i64, scratch_operands = 2 : i64, tpu.core_type = #tpu.core_type<tc>, window_params = [{transform_indices = @transform_0, window_bounds = array<i64: 4, 2, 64>}, {pipeline_mode = #tpu.pipeline_mode<synchronous>, transform_indices = @transform_1, window_bounds = array<i64: 16, 64>}, {transform_indices = @transform_2, window_bounds = array<i64: 4, 2, 16>}]} {
    %c0_i32 = arith.constant 0 : i32
    %0 = arith.cmpi eq, %arg0, %c0_i32 : i32
    %1 = arith.extui %0 : i1 to i32
    %c0_i32_0 = arith.constant 0 : i32
    %2 = arith.cmpi ne, %1, %c0_i32_0 : i32
    scf.if %2 {
      %cst_46 = arith.constant 0.000000e+00 : f32
      %136 = vector.broadcast %cst_46 : f32 to vector<2x16xf32>
      %c0_47 = arith.constant 0 : index
      %c0_48 = arith.constant 0 : index
      %137 = vector.load %arg4[%c0_47, %c0_48] : memref<2x16xf32, #tpu.memory_space<vmem>>, vector<2x16xf32>
      tpu.vector_store %arg4[%c0_47, %c0_48], %136 {strides = array<i32>} : memref<2x16xf32, #tpu.memory_space<vmem>>, vector<2x16xf32>,
      %cst_49 = arith.constant 0.000000e+00 : f32
      %138 = vector.broadcast %cst_49 : f32 to vector<2x16xf32>
      %c0_50 = arith.constant 0 : index
      %c0_51 = arith.constant 0 : index
      %139 = vector.load %arg5[%c0_50, %c0_51] : memref<2x16xf32, #tpu.memory_space<vmem>>, vector<2x16xf32>
      tpu.vector_store %arg5[%c0_50, %c0_51], %138 {strides = array<i32>} : memref<2x16xf32, #tpu.memory_space<vmem>>, vector<2x16xf32>,
    } else {
    }
    %c0 = arith.constant 0 : index
    %c0_1 = arith.constant 0 : index
    %3 = vector.load %arg2[%c0, %c0_1] : memref<16x64xf32, #tpu.memory_space<vmem>>, vector<16x64xf32>
    %c0_2 = arith.constant 0 : index
    %c0_3 = arith.constant 0 : index
    %4 = vector.load %arg4[%c0_2, %c0_3] : memref<2x16xf32, #tpu.memory_space<vmem>>, vector<2x16xf32>
    %c0_4 = arith.constant 0 : index
    %c0_5 = arith.constant 0 : index
    %5 = vector.load %arg5[%c0_4, %c0_5] : memref<2x16xf32, #tpu.memory_space<vmem>>, vector<2x16xf32>
    %c0_6 = arith.constant 0 : index
    %c0_7 = arith.constant 0 : index
    %c0_8 = arith.constant 0 : index
    %6 = vector.load %arg1[%c0_6, %c0_7, %c0_8] : memref<4x2x64xf32, #tpu.memory_space<vmem>>, vector<1x2x64xf32>
    %7 = vector.shape_cast %6 : vector<1x2x64xf32> to vector<2x64xf32>
    %cst = arith.constant dense<0.000000e+00> : vector<2x64xf32>
    %8 = tpu.matmul %4, %3, %cst {dimension_numbers = #tpu.dot_dimension_numbers<[1], [0], [0], [1], [0, 0, 1, 1], [], []>} : vector<2x16xf32>, vector<16x64xf32>, vector<2x64xf32> -> vector<2x64xf32>
    %9 = arith.addf %7, %8 : vector<2x64xf32>
    %10 = vector.extract_strided_slice %9 {offsets = [0, 0], sizes = [2, 16], strides = [1, 1]} : vector<2x64xf32> to vector<2x16xf32>
    %11 = arith.negf %10 : vector<2x16xf32>
    %12 = math.exp %11 : vector<2x16xf32>
    %cst_9 = arith.constant 1.000000e+00 : f32
    %13 = vector.broadcast %cst_9 : f32 to vector<2x16xf32>
    %14 = arith.addf %13, %12 : vector<2x16xf32>
    %15 = arith.divf %13, %14 : vector<2x16xf32>
    %16 = vector.extract_strided_slice %9 {offsets = [0, 16], sizes = [2, 16], strides = [1, 1]} : vector<2x64xf32> to vector<2x16xf32>
    %17 = arith.negf %16 : vector<2x16xf32>
    %18 = math.exp %17 : vector<2x16xf32>
    %cst_10 = arith.constant 1.000000e+00 : f32
    %19 = vector.broadcast %cst_10 : f32 to vector<2x16xf32>
    %20 = arith.addf %19, %18 : vector<2x16xf32>
    %21 = arith.divf %19, %20 : vector<2x16xf32>
    %22 = vector.extract_strided_slice %9 {offsets = [0, 32], sizes = [2, 16], strides = [1, 1]} : vector<2x64xf32> to vector<2x16xf32>
    %23 = math.tanh %22 : vector<2x16xf32>
    %24 = vector.extract_strided_slice %9 {offsets = [0, 48], sizes = [2, 16], strides = [1, 1]} : vector<2x64xf32> to vector<2x16xf32>
    %25 = arith.negf %24 : vector<2x16xf32>
    %26 = math.exp %25 : vector<2x16xf32>
    %cst_11 = arith.constant 1.000000e+00 : f32
    %27 = vector.broadcast %cst_11 : f32 to vector<2x16xf32>
    %28 = arith.addf %27, %26 : vector<2x16xf32>
    %29 = arith.divf %27, %28 : vector<2x16xf32>
    %30 = arith.mulf %21, %5 : vector<2x16xf32>
    %31 = arith.mulf %15, %23 : vector<2x16xf32>
    %32 = arith.addf %30, %31 : vector<2x16xf32>
    %33 = math.tanh %32 : vector<2x16xf32>
    %34 = arith.mulf %29, %33 : vector<2x16xf32>
    %c0_12 = arith.constant 0 : index
    %c0_13 = arith.constant 0 : index
    %c0_14 = arith.constant 0 : index
    %35 = vector.load %arg3[%c0_12, %c0_13, %c0_14] : memref<4x2x16xf32, #tpu.memory_space<vmem>>, vector<1x2x16xf32>
    %36 = vector.shape_cast %35 : vector<1x2x16xf32> to vector<2x16xf32>
    %37 = vector.shape_cast %34 : vector<2x16xf32> to vector<1x2x16xf32>
    tpu.vector_store %arg3[%c0_12, %c0_13, %c0_14], %37 {strides = array<i32>} : memref<4x2x16xf32, #tpu.memory_space<vmem>>, vector<1x2x16xf32>,
    %c1 = arith.constant 1 : index
    %c0_15 = arith.constant 0 : index
    %c0_16 = arith.constant 0 : index
    %38 = vector.load %arg1[%c1, %c0_15, %c0_16] : memref<4x2x64xf32, #tpu.memory_space<vmem>>, vector<1x2x64xf32>
    %39 = vector.shape_cast %38 : vector<1x2x64xf32> to vector<2x64xf32>
    %cst_17 = arith.constant dense<0.000000e+00> : vector<2x64xf32>
    %40 = tpu.matmul %34, %3, %cst_17 {dimension_numbers = #tpu.dot_dimension_numbers<[1], [0], [0], [1], [0, 0, 1, 1], [], []>} : vector<2x16xf32>, vector<16x64xf32>, vector<2x64xf32> -> vector<2x64xf32>
    %41 = arith.addf %39, %40 : vector<2x64xf32>
    %42 = vector.extract_strided_slice %41 {offsets = [0, 0], sizes = [2, 16], strides = [1, 1]} : vector<2x64xf32> to vector<2x16xf32>
    %43 = arith.negf %42 : vector<2x16xf32>
    %44 = math.exp %43 : vector<2x16xf32>
    %cst_18 = arith.constant 1.000000e+00 : f32
    %45 = vector.broadcast %cst_18 : f32 to vector<2x16xf32>
    %46 = arith.addf %45, %44 : vector<2x16xf32>
    %47 = arith.divf %45, %46 : vector<2x16xf32>
    %48 = vector.extract_strided_slice %41 {offsets = [0, 16], sizes = [2, 16], strides = [1, 1]} : vector<2x64xf32> to vector<2x16xf32>
    %49 = arith.negf %48 : vector<2x16xf32>
    %50 = math.exp %49 : vector<2x16xf32>
    %cst_19 = arith.constant 1.000000e+00 : f32
    %51 = vector.broadcast %cst_19 : f32 to vector<2x16xf32>
    %52 = arith.addf %51, %50 : vector<2x16xf32>
    %53 = arith.divf %51, %52 : vector<2x16xf32>
    %54 = vector.extract_strided_slice %41 {offsets = [0, 32], sizes = [2, 16], strides = [1, 1]} : vector<2x64xf32> to vector<2x16xf32>
    %55 = math.tanh %54 : vector<2x16xf32>
    %56 = vector.extract_strided_slice %41 {offsets = [0, 48], sizes = [2, 16], strides = [1, 1]} : vector<2x64xf32> to vector<2x16xf32>
    %57 = arith.negf %56 : vector<2x16xf32>
    %58 = math.exp %57 : vector<2x16xf32>
    %cst_20 = arith.constant 1.000000e+00 : f32
    %59 = vector.broadcast %cst_20 : f32 to vector<2x16xf32>
    %60 = arith.addf %59, %58 : vector<2x16xf32>
    %61 = arith.divf %59, %60 : vector<2x16xf32>
    %62 = arith.mulf %53, %32 : vector<2x16xf32>
    %63 = arith.mulf %47, %55 : vector<2x16xf32>
    %64 = arith.addf %62, %63 : vector<2x16xf32>
    %65 = math.tanh %64 : vector<2x16xf32>
    %66 = arith.mulf %61, %65 : vector<2x16xf32>
    %c1_21 = arith.constant 1 : index
    %c0_22 = arith.constant 0 : index
    %c0_23 = arith.constant 0 : index
    %67 = vector.load %arg3[%c1_21, %c0_22, %c0_23] : memref<4x2x16xf32, #tpu.memory_space<vmem>>, vector<1x2x16xf32>
    %68 = vector.shape_cast %67 : vector<1x2x16xf32> to vector<2x16xf32>
    %69 = vector.shape_cast %66 : vector<2x16xf32> to vector<1x2x16xf32>
    tpu.vector_store %arg3[%c1_21, %c0_22, %c0_23], %69 {strides = array<i32>} : memref<4x2x16xf32, #tpu.memory_space<vmem>>, vector<1x2x16xf32>,
    %c2 = arith.constant 2 : index
    %c0_24 = arith.constant 0 : index
    %c0_25 = arith.constant 0 : index
    %70 = vector.load %arg1[%c2, %c0_24, %c0_25] : memref<4x2x64xf32, #tpu.memory_space<vmem>>, vector<1x2x64xf32>
    %71 = vector.shape_cast %70 : vector<1x2x64xf32> to vector<2x64xf32>
    %cst_26 = arith.constant dense<0.000000e+00> : vector<2x64xf32>
    %72 = tpu.matmul %66, %3, %cst_26 {dimension_numbers = #tpu.dot_dimension_numbers<[1], [0], [0], [1], [0, 0, 1, 1], [], []>} : vector<2x16xf32>, vector<16x64xf32>, vector<2x64xf32> -> vector<2x64xf32>
    %73 = arith.addf %71, %72 : vector<2x64xf32>
    %74 = vector.extract_strided_slice %73 {offsets = [0, 0], sizes = [2, 16], strides = [1, 1]} : vector<2x64xf32> to vector<2x16xf32>
    %75 = arith.negf %74 : vector<2x16xf32>
    %76 = math.exp %75 : vector<2x16xf32>
    %cst_27 = arith.constant 1.000000e+00 : f32
    %77 = vector.broadcast %cst_27 : f32 to vector<2x16xf32>
    %78 = arith.addf %77, %76 : vector<2x16xf32>
    %79 = arith.divf %77, %78 : vector<2x16xf32>
    %80 = vector.extract_strided_slice %73 {offsets = [0, 16], sizes = [2, 16], strides = [1, 1]} : vector<2x64xf32> to vector<2x16xf32>
    %81 = arith.negf %80 : vector<2x16xf32>
    %82 = math.exp %81 : vector<2x16xf32>
    %cst_28 = arith.constant 1.000000e+00 : f32
    %83 = vector.broadcast %cst_28 : f32 to vector<2x16xf32>
    %84 = arith.addf %83, %82 : vector<2x16xf32>
    %85 = arith.divf %83, %84 : vector<2x16xf32>
    %86 = vector.extract_strided_slice %73 {offsets = [0, 32], sizes = [2, 16], strides = [1, 1]} : vector<2x64xf32> to vector<2x16xf32>
    %87 = math.tanh %86 : vector<2x16xf32>
    %88 = vector.extract_strided_slice %73 {offsets = [0, 48], sizes = [2, 16], strides = [1, 1]} : vector<2x64xf32> to vector<2x16xf32>
    %89 = arith.negf %88 : vector<2x16xf32>
    %90 = math.exp %89 : vector<2x16xf32>
    %cst_29 = arith.constant 1.000000e+00 : f32
    %91 = vector.broadcast %cst_29 : f32 to vector<2x16xf32>
    %92 = arith.addf %91, %90 : vector<2x16xf32>
    %93 = arith.divf %91, %92 : vector<2x16xf32>
    %94 = arith.mulf %85, %64 : vector<2x16xf32>
    %95 = arith.mulf %79, %87 : vector<2x16xf32>
    %96 = arith.addf %94, %95 : vector<2x16xf32>
    %97 = math.tanh %96 : vector<2x16xf32>
    %98 = arith.mulf %93, %97 : vector<2x16xf32>
    %c2_30 = arith.constant 2 : index
    %c0_31 = arith.constant 0 : index
    %c0_32 = arith.constant 0 : index
    %99 = vector.load %arg3[%c2_30, %c0_31, %c0_32] : memref<4x2x16xf32, #tpu.memory_space<vmem>>, vector<1x2x16xf32>
    %100 = vector.shape_cast %99 : vector<1x2x16xf32> to vector<2x16xf32>
    %101 = vector.shape_cast %98 : vector<2x16xf32> to vector<1x2x16xf32>
    tpu.vector_store %arg3[%c2_30, %c0_31, %c0_32], %101 {strides = array<i32>} : memref<4x2x16xf32, #tpu.memory_space<vmem>>, vector<1x2x16xf32>,
    %c3 = arith.constant 3 : index
    %c0_33 = arith.constant 0 : index
    %c0_34 = arith.constant 0 : index
    %102 = vector.load %arg1[%c3, %c0_33, %c0_34] : memref<4x2x64xf32, #tpu.memory_space<vmem>>, vector<1x2x64xf32>
    %103 = vector.shape_cast %102 : vector<1x2x64xf32> to vector<2x64xf32>
    %cst_35 = arith.constant dense<0.000000e+00> : vector<2x64xf32>
    %104 = tpu.matmul %98, %3, %cst_35 {dimension_numbers = #tpu.dot_dimension_numbers<[1], [0], [0], [1], [0, 0, 1, 1], [], []>} : vector<2x16xf32>, vector<16x64xf32>, vector<2x64xf32> -> vector<2x64xf32>
    %105 = arith.addf %103, %104 : vector<2x64xf32>
    %106 = vector.extract_strided_slice %105 {offsets = [0, 0], sizes = [2, 16], strides = [1, 1]} : vector<2x64xf32> to vector<2x16xf32>
    %107 = arith.negf %106 : vector<2x16xf32>
    %108 = math.exp %107 : vector<2x16xf32>
    %cst_36 = arith.constant 1.000000e+00 : f32
    %109 = vector.broadcast %cst_36 : f32 to vector<2x16xf32>
    %110 = arith.addf %109, %108 : vector<2x16xf32>
    %111 = arith.divf %109, %110 : vector<2x16xf32>
    %112 = vector.extract_strided_slice %105 {offsets = [0, 16], sizes = [2, 16], strides = [1, 1]} : vector<2x64xf32> to vector<2x16xf32>
    %113 = arith.negf %112 : vector<2x16xf32>
    %114 = math.exp %113 : vector<2x16xf32>
    %cst_37 = arith.constant 1.000000e+00 : f32
    %115 = vector.broadcast %cst_37 : f32 to vector<2x16xf32>
    %116 = arith.addf %115, %114 : vector<2x16xf32>
    %117 = arith.divf %115, %116 : vector<2x16xf32>
    %118 = vector.extract_strided_slice %105 {offsets = [0, 32], sizes = [2, 16], strides = [1, 1]} : vector<2x64xf32> to vector<2x16xf32>
    %119 = math.tanh %118 : vector<2x16xf32>
    %120 = vector.extract_strided_slice %105 {offsets = [0, 48], sizes = [2, 16], strides = [1, 1]} : vector<2x64xf32> to vector<2x16xf32>
    %121 = arith.negf %120 : vector<2x16xf32>
    %122 = math.exp %121 : vector<2x16xf32>
    %cst_38 = arith.constant 1.000000e+00 : f32
    %123 = vector.broadcast %cst_38 : f32 to vector<2x16xf32>
    %124 = arith.addf %123, %122 : vector<2x16xf32>
    %125 = arith.divf %123, %124 : vector<2x16xf32>
    %126 = arith.mulf %117, %96 : vector<2x16xf32>
    %127 = arith.mulf %111, %119 : vector<2x16xf32>
    %128 = arith.addf %126, %127 : vector<2x16xf32>
    %129 = math.tanh %128 : vector<2x16xf32>
    %130 = arith.mulf %125, %129 : vector<2x16xf32>
    %c3_39 = arith.constant 3 : index
    %c0_40 = arith.constant 0 : index
    %c0_41 = arith.constant 0 : index
    %131 = vector.load %arg3[%c3_39, %c0_40, %c0_41] : memref<4x2x16xf32, #tpu.memory_space<vmem>>, vector<1x2x16xf32>
    %132 = vector.shape_cast %131 : vector<1x2x16xf32> to vector<2x16xf32>
    %133 = vector.shape_cast %130 : vector<2x16xf32> to vector<1x2x16xf32>
    tpu.vector_store %arg3[%c3_39, %c0_40, %c0_41], %133 {strides = array<i32>} : memref<4x2x16xf32, #tpu.memory_space<vmem>>, vector<1x2x16xf32>,
    %c0_42 = arith.constant 0 : index
    %c0_43 = arith.constant 0 : index
    %134 = vector.load %arg4[%c0_42, %c0_43] : memref<2x16xf32, #tpu.memory_space<vmem>>, vector<2x16xf32>
    tpu.vector_store %arg4[%c0_42, %c0_43], %130 {strides = array<i32>} : memref<2x16xf32, #tpu.memory_space<vmem>>, vector<2x16xf32>,
    %c0_44 = arith.constant 0 : index
    %c0_45 = arith.constant 0 : index
    %135 = vector.load %arg5[%c0_44, %c0_45] : memref<2x16xf32, #tpu.memory_space<vmem>>, vector<2x16xf32>
    tpu.vector_store %arg5[%c0_44, %c0_45], %128 {strides = array<i32>} : memref<2x16xf32, #tpu.memory_space<vmem>>, vector<2x16xf32>,
    return
  }
  func.func @transform_0(%arg0: i32) -> (i32, i32, i32) {
    %c0_i32 = arith.constant 0 : i32
    %c0_i32_0 = arith.constant 0 : i32
    %c0_i32_1 = arith.constant 0 : i32
    return %arg0, %c0_i32, %c0_i32_0 : i32, i32, i32
  }
  func.func @transform_1(%arg0: i32) -> (i32, i32) {
    %c0_i32 = arith.constant 0 : i32
    %c0_i32_0 = arith.constant 0 : i32
    %c0_i32_1 = arith.constant 0 : i32
    return %c0_i32, %c0_i32_0 : i32, i32
  }
  func.func @transform_2(%arg0: i32) -> (i32, i32, i32) {
    %c0_i32 = arith.constant 0 : i32
    %c0_i32_0 = arith.constant 0 : i32
    %c0_i32_1 = arith.constant 0 : i32
    return %arg0, %c0_i32, %c0_i32_0 : i32, i32, i32
  }
}

module attributes {stable_mosaic.version = 11 : i64} {
  func.func @_linear_kernel(%arg0: i32, %arg1: memref<16x4xf32, #tpu.memory_space<vmem>>, %arg2: memref<4x128xf32, #tpu.memory_space<vmem>>, %arg3: memref<1x128xf32, #tpu.memory_space<vmem>>, %arg4: memref<16x128xf32, #tpu.memory_space<vmem>>) attributes {dimension_semantics = [#tpu.dimension_semantics<parallel>], iteration_bounds = array<i64: 1>, scalar_prefetch = 0 : i64, scratch_operands = 0 : i64, tpu.core_type = #tpu.core_type<tc>, window_params = [{transform_indices = @transform_0, window_bounds = array<i64: 16, 4>}, {pipeline_mode = #tpu.pipeline_mode<synchronous>, transform_indices = @transform_1, window_bounds = array<i64: 4, 128>}, {pipeline_mode = #tpu.pipeline_mode<synchronous>, transform_indices = @transform_2, window_bounds = array<i64: 1, 128>}, {transform_indices = @transform_3, window_bounds = array<i64: 16, 128>}]} {
    %c0 = arith.constant 0 : index
    %c0_0 = arith.constant 0 : index
    %0 = vector.load %arg1[%c0, %c0_0] : memref<16x4xf32, #tpu.memory_space<vmem>>, vector<16x4xf32>
    %c0_1 = arith.constant 0 : index
    %c0_2 = arith.constant 0 : index
    %1 = vector.load %arg2[%c0_1, %c0_2] : memref<4x128xf32, #tpu.memory_space<vmem>>, vector<4x128xf32>
    %cst = arith.constant dense<0.000000e+00> : vector<16x128xf32>
    %2 = tpu.matmul %0, %1, %cst {dimension_numbers = #tpu.dot_dimension_numbers<[1], [0], [0], [1], [0, 0, 1, 1], [], []>} : vector<16x4xf32>, vector<4x128xf32>, vector<16x128xf32> -> vector<16x128xf32>
    %c0_3 = arith.constant 0 : index
    %c0_4 = arith.constant 0 : index
    %3 = vector.load %arg3[%c0_3, %c0_4] : memref<1x128xf32, #tpu.memory_space<vmem>>, vector<1x128xf32>
    %4 = vector.broadcast %3 : vector<1x128xf32> to vector<16x128xf32>
    %5 = arith.addf %2, %4 : vector<16x128xf32>
    %c0_5 = arith.constant 0 : index
    %c0_6 = arith.constant 0 : index
    %6 = vector.load %arg4[%c0_5, %c0_6] : memref<16x128xf32, #tpu.memory_space<vmem>>, vector<16x128xf32>
    tpu.vector_store %arg4[%c0_5, %c0_6], %5 {strides = array<i32>} : memref<16x128xf32, #tpu.memory_space<vmem>>, vector<16x128xf32>,
    return
  }
  func.func @transform_0(%arg0: i32) -> (i32, i32) {
    %c0_i32 = arith.constant 0 : i32
    %c0_i32_0 = arith.constant 0 : i32
    return %arg0, %c0_i32 : i32, i32
  }
  func.func @transform_1(%arg0: i32) -> (i32, i32) {
    %c0_i32 = arith.constant 0 : i32
    %c0_i32_0 = arith.constant 0 : i32
    %c0_i32_1 = arith.constant 0 : i32
    return %c0_i32, %c0_i32_0 : i32, i32
  }
  func.func @transform_2(%arg0: i32) -> (i32, i32) {
    %c0_i32 = arith.constant 0 : i32
    %c0_i32_0 = arith.constant 0 : i32
    %c0_i32_1 = arith.constant 0 : i32
    return %c0_i32, %c0_i32_0 : i32, i32
  }
  func.func @transform_3(%arg0: i32) -> (i32, i32) {
    %c0_i32 = arith.constant 0 : i32
    %c0_i32_0 = arith.constant 0 : i32
    return %arg0, %c0_i32 : i32, i32
  }
}

module attributes {stable_mosaic.version = 11 : i64} {
  func.func @_lstm_recurrence_kernel(%arg0: i32, %arg1: memref<8x2x128xf32, #tpu.memory_space<vmem>>, %arg2: memref<32x128xf32, #tpu.memory_space<vmem>>, %arg3: memref<8x2x32xf32, #tpu.memory_space<vmem>>, %arg4: memref<2x32xf32, #tpu.memory_space<vmem>>, %arg5: memref<2x32xf32, #tpu.memory_space<vmem>>) attributes {dimension_semantics = [#tpu.dimension_semantics<arbitrary>], iteration_bounds = array<i64: 1>, scalar_prefetch = 0 : i64, scratch_operands = 2 : i64, tpu.core_type = #tpu.core_type<tc>, window_params = [{transform_indices = @transform_0, window_bounds = array<i64: 8, 2, 128>}, {pipeline_mode = #tpu.pipeline_mode<synchronous>, transform_indices = @transform_1, window_bounds = array<i64: 32, 128>}, {transform_indices = @transform_2, window_bounds = array<i64: 8, 2, 32>}]} {
    %c0_i32 = arith.constant 0 : i32
    %0 = arith.cmpi eq, %arg0, %c0_i32 : i32
    %1 = arith.extui %0 : i1 to i32
    %c0_i32_0 = arith.constant 0 : i32
    %2 = arith.cmpi ne, %1, %c0_i32_0 : i32
    scf.if %2 {
      %cst_82 = arith.constant 0.000000e+00 : f32
      %264 = vector.broadcast %cst_82 : f32 to vector<2x32xf32>
      %c0_83 = arith.constant 0 : index
      %c0_84 = arith.constant 0 : index
      %265 = vector.load %arg4[%c0_83, %c0_84] : memref<2x32xf32, #tpu.memory_space<vmem>>, vector<2x32xf32>
      tpu.vector_store %arg4[%c0_83, %c0_84], %264 {strides = array<i32>} : memref<2x32xf32, #tpu.memory_space<vmem>>, vector<2x32xf32>,
      %cst_85 = arith.constant 0.000000e+00 : f32
      %266 = vector.broadcast %cst_85 : f32 to vector<2x32xf32>
      %c0_86 = arith.constant 0 : index
      %c0_87 = arith.constant 0 : index
      %267 = vector.load %arg5[%c0_86, %c0_87] : memref<2x32xf32, #tpu.memory_space<vmem>>, vector<2x32xf32>
      tpu.vector_store %arg5[%c0_86, %c0_87], %266 {strides = array<i32>} : memref<2x32xf32, #tpu.memory_space<vmem>>, vector<2x32xf32>,
    } else {
    }
    %c0 = arith.constant 0 : index
    %c0_1 = arith.constant 0 : index
    %3 = vector.load %arg2[%c0, %c0_1] : memref<32x128xf32, #tpu.memory_space<vmem>>, vector<32x128xf32>
    %c0_2 = arith.constant 0 : index
    %c0_3 = arith.constant 0 : index
    %4 = vector.load %arg4[%c0_2, %c0_3] : memref<2x32xf32, #tpu.memory_space<vmem>>, vector<2x32xf32>
    %c0_4 = arith.constant 0 : index
    %c0_5 = arith.constant 0 : index
    %5 = vector.load %arg5[%c0_4, %c0_5] : memref<2x32xf32, #tpu.memory_space<vmem>>, vector<2x32xf32>
    %c0_6 = arith.constant 0 : index
    %c0_7 = arith.constant 0 : index
    %c0_8 = arith.constant 0 : index
    %6 = vector.load %arg1[%c0_6, %c0_7, %c0_8] : memref<8x2x128xf32, #tpu.memory_space<vmem>>, vector<1x2x128xf32>
    %7 = vector.shape_cast %6 : vector<1x2x128xf32> to vector<2x128xf32>
    %cst = arith.constant dense<0.000000e+00> : vector<2x128xf32>
    %8 = tpu.matmul %4, %3, %cst {dimension_numbers = #tpu.dot_dimension_numbers<[1], [0], [0], [1], [0, 0, 1, 1], [], []>} : vector<2x32xf32>, vector<32x128xf32>, vector<2x128xf32> -> vector<2x128xf32>
    %9 = arith.addf %7, %8 : vector<2x128xf32>
    %10 = vector.extract_strided_slice %9 {offsets = [0, 0], sizes = [2, 32], strides = [1, 1]} : vector<2x128xf32> to vector<2x32xf32>
    %11 = arith.negf %10 : vector<2x32xf32>
    %12 = math.exp %11 : vector<2x32xf32>
    %cst_9 = arith.constant 1.000000e+00 : f32
    %13 = vector.broadcast %cst_9 : f32 to vector<2x32xf32>
    %14 = arith.addf %13, %12 : vector<2x32xf32>
    %15 = arith.divf %13, %14 : vector<2x32xf32>
    %16 = vector.extract_strided_slice %9 {offsets = [0, 32], sizes = [2, 32], strides = [1, 1]} : vector<2x128xf32> to vector<2x32xf32>
    %17 = arith.negf %16 : vector<2x32xf32>
    %18 = math.exp %17 : vector<2x32xf32>
    %cst_10 = arith.constant 1.000000e+00 : f32
    %19 = vector.broadcast %cst_10 : f32 to vector<2x32xf32>
    %20 = arith.addf %19, %18 : vector<2x32xf32>
    %21 = arith.divf %19, %20 : vector<2x32xf32>
    %22 = vector.extract_strided_slice %9 {offsets = [0, 64], sizes = [2, 32], strides = [1, 1]} : vector<2x128xf32> to vector<2x32xf32>
    %23 = math.tanh %22 : vector<2x32xf32>
    %24 = vector.extract_strided_slice %9 {offsets = [0, 96], sizes = [2, 32], strides = [1, 1]} : vector<2x128xf32> to vector<2x32xf32>
    %25 = arith.negf %24 : vector<2x32xf32>
    %26 = math.exp %25 : vector<2x32xf32>
    %cst_11 = arith.constant 1.000000e+00 : f32
    %27 = vector.broadcast %cst_11 : f32 to vector<2x32xf32>
    %28 = arith.addf %27, %26 : vector<2x32xf32>
    %29 = arith.divf %27, %28 : vector<2x32xf32>
    %30 = arith.mulf %21, %5 : vector<2x32xf32>
    %31 = arith.mulf %15, %23 : vector<2x32xf32>
    %32 = arith.addf %30, %31 : vector<2x32xf32>
    %33 = math.tanh %32 : vector<2x32xf32>
    %34 = arith.mulf %29, %33 : vector<2x32xf32>
    %c0_12 = arith.constant 0 : index
    %c0_13 = arith.constant 0 : index
    %c0_14 = arith.constant 0 : index
    %35 = vector.load %arg3[%c0_12, %c0_13, %c0_14] : memref<8x2x32xf32, #tpu.memory_space<vmem>>, vector<1x2x32xf32>
    %36 = vector.shape_cast %35 : vector<1x2x32xf32> to vector<2x32xf32>
    %37 = vector.shape_cast %34 : vector<2x32xf32> to vector<1x2x32xf32>
    tpu.vector_store %arg3[%c0_12, %c0_13, %c0_14], %37 {strides = array<i32>} : memref<8x2x32xf32, #tpu.memory_space<vmem>>, vector<1x2x32xf32>,
    %c1 = arith.constant 1 : index
    %c0_15 = arith.constant 0 : index
    %c0_16 = arith.constant 0 : index
    %38 = vector.load %arg1[%c1, %c0_15, %c0_16] : memref<8x2x128xf32, #tpu.memory_space<vmem>>, vector<1x2x128xf32>
    %39 = vector.shape_cast %38 : vector<1x2x128xf32> to vector<2x128xf32>
    %cst_17 = arith.constant dense<0.000000e+00> : vector<2x128xf32>
    %40 = tpu.matmul %34, %3, %cst_17 {dimension_numbers = #tpu.dot_dimension_numbers<[1], [0], [0], [1], [0, 0, 1, 1], [], []>} : vector<2x32xf32>, vector<32x128xf32>, vector<2x128xf32> -> vector<2x128xf32>
    %41 = arith.addf %39, %40 : vector<2x128xf32>
    %42 = vector.extract_strided_slice %41 {offsets = [0, 0], sizes = [2, 32], strides = [1, 1]} : vector<2x128xf32> to vector<2x32xf32>
    %43 = arith.negf %42 : vector<2x32xf32>
    %44 = math.exp %43 : vector<2x32xf32>
    %cst_18 = arith.constant 1.000000e+00 : f32
    %45 = vector.broadcast %cst_18 : f32 to vector<2x32xf32>
    %46 = arith.addf %45, %44 : vector<2x32xf32>
    %47 = arith.divf %45, %46 : vector<2x32xf32>
    %48 = vector.extract_strided_slice %41 {offsets = [0, 32], sizes = [2, 32], strides = [1, 1]} : vector<2x128xf32> to vector<2x32xf32>
    %49 = arith.negf %48 : vector<2x32xf32>
    %50 = math.exp %49 : vector<2x32xf32>
    %cst_19 = arith.constant 1.000000e+00 : f32
    %51 = vector.broadcast %cst_19 : f32 to vector<2x32xf32>
    %52 = arith.addf %51, %50 : vector<2x32xf32>
    %53 = arith.divf %51, %52 : vector<2x32xf32>
    %54 = vector.extract_strided_slice %41 {offsets = [0, 64], sizes = [2, 32], strides = [1, 1]} : vector<2x128xf32> to vector<2x32xf32>
    %55 = math.tanh %54 : vector<2x32xf32>
    %56 = vector.extract_strided_slice %41 {offsets = [0, 96], sizes = [2, 32], strides = [1, 1]} : vector<2x128xf32> to vector<2x32xf32>
    %57 = arith.negf %56 : vector<2x32xf32>
    %58 = math.exp %57 : vector<2x32xf32>
    %cst_20 = arith.constant 1.000000e+00 : f32
    %59 = vector.broadcast %cst_20 : f32 to vector<2x32xf32>
    %60 = arith.addf %59, %58 : vector<2x32xf32>
    %61 = arith.divf %59, %60 : vector<2x32xf32>
    %62 = arith.mulf %53, %32 : vector<2x32xf32>
    %63 = arith.mulf %47, %55 : vector<2x32xf32>
    %64 = arith.addf %62, %63 : vector<2x32xf32>
    %65 = math.tanh %64 : vector<2x32xf32>
    %66 = arith.mulf %61, %65 : vector<2x32xf32>
    %c1_21 = arith.constant 1 : index
    %c0_22 = arith.constant 0 : index
    %c0_23 = arith.constant 0 : index
    %67 = vector.load %arg3[%c1_21, %c0_22, %c0_23] : memref<8x2x32xf32, #tpu.memory_space<vmem>>, vector<1x2x32xf32>
    %68 = vector.shape_cast %67 : vector<1x2x32xf32> to vector<2x32xf32>
    %69 = vector.shape_cast %66 : vector<2x32xf32> to vector<1x2x32xf32>
    tpu.vector_store %arg3[%c1_21, %c0_22, %c0_23], %69 {strides = array<i32>} : memref<8x2x32xf32, #tpu.memory_space<vmem>>, vector<1x2x32xf32>,
    %c2 = arith.constant 2 : index
    %c0_24 = arith.constant 0 : index
    %c0_25 = arith.constant 0 : index
    %70 = vector.load %arg1[%c2, %c0_24, %c0_25] : memref<8x2x128xf32, #tpu.memory_space<vmem>>, vector<1x2x128xf32>
    %71 = vector.shape_cast %70 : vector<1x2x128xf32> to vector<2x128xf32>
    %cst_26 = arith.constant dense<0.000000e+00> : vector<2x128xf32>
    %72 = tpu.matmul %66, %3, %cst_26 {dimension_numbers = #tpu.dot_dimension_numbers<[1], [0], [0], [1], [0, 0, 1, 1], [], []>} : vector<2x32xf32>, vector<32x128xf32>, vector<2x128xf32> -> vector<2x128xf32>
    %73 = arith.addf %71, %72 : vector<2x128xf32>
    %74 = vector.extract_strided_slice %73 {offsets = [0, 0], sizes = [2, 32], strides = [1, 1]} : vector<2x128xf32> to vector<2x32xf32>
    %75 = arith.negf %74 : vector<2x32xf32>
    %76 = math.exp %75 : vector<2x32xf32>
    %cst_27 = arith.constant 1.000000e+00 : f32
    %77 = vector.broadcast %cst_27 : f32 to vector<2x32xf32>
    %78 = arith.addf %77, %76 : vector<2x32xf32>
    %79 = arith.divf %77, %78 : vector<2x32xf32>
    %80 = vector.extract_strided_slice %73 {offsets = [0, 32], sizes = [2, 32], strides = [1, 1]} : vector<2x128xf32> to vector<2x32xf32>
    %81 = arith.negf %80 : vector<2x32xf32>
    %82 = math.exp %81 : vector<2x32xf32>
    %cst_28 = arith.constant 1.000000e+00 : f32
    %83 = vector.broadcast %cst_28 : f32 to vector<2x32xf32>
    %84 = arith.addf %83, %82 : vector<2x32xf32>
    %85 = arith.divf %83, %84 : vector<2x32xf32>
    %86 = vector.extract_strided_slice %73 {offsets = [0, 64], sizes = [2, 32], strides = [1, 1]} : vector<2x128xf32> to vector<2x32xf32>
    %87 = math.tanh %86 : vector<2x32xf32>
    %88 = vector.extract_strided_slice %73 {offsets = [0, 96], sizes = [2, 32], strides = [1, 1]} : vector<2x128xf32> to vector<2x32xf32>
    %89 = arith.negf %88 : vector<2x32xf32>
    %90 = math.exp %89 : vector<2x32xf32>
    %cst_29 = arith.constant 1.000000e+00 : f32
    %91 = vector.broadcast %cst_29 : f32 to vector<2x32xf32>
    %92 = arith.addf %91, %90 : vector<2x32xf32>
    %93 = arith.divf %91, %92 : vector<2x32xf32>
    %94 = arith.mulf %85, %64 : vector<2x32xf32>
    %95 = arith.mulf %79, %87 : vector<2x32xf32>
    %96 = arith.addf %94, %95 : vector<2x32xf32>
    %97 = math.tanh %96 : vector<2x32xf32>
    %98 = arith.mulf %93, %97 : vector<2x32xf32>
    %c2_30 = arith.constant 2 : index
    %c0_31 = arith.constant 0 : index
    %c0_32 = arith.constant 0 : index
    %99 = vector.load %arg3[%c2_30, %c0_31, %c0_32] : memref<8x2x32xf32, #tpu.memory_space<vmem>>, vector<1x2x32xf32>
    %100 = vector.shape_cast %99 : vector<1x2x32xf32> to vector<2x32xf32>
    %101 = vector.shape_cast %98 : vector<2x32xf32> to vector<1x2x32xf32>
    tpu.vector_store %arg3[%c2_30, %c0_31, %c0_32], %101 {strides = array<i32>} : memref<8x2x32xf32, #tpu.memory_space<vmem>>, vector<1x2x32xf32>,
    %c3 = arith.constant 3 : index
    %c0_33 = arith.constant 0 : index
    %c0_34 = arith.constant 0 : index
    %102 = vector.load %arg1[%c3, %c0_33, %c0_34] : memref<8x2x128xf32, #tpu.memory_space<vmem>>, vector<1x2x128xf32>
    %103 = vector.shape_cast %102 : vector<1x2x128xf32> to vector<2x128xf32>
    %cst_35 = arith.constant dense<0.000000e+00> : vector<2x128xf32>
    %104 = tpu.matmul %98, %3, %cst_35 {dimension_numbers = #tpu.dot_dimension_numbers<[1], [0], [0], [1], [0, 0, 1, 1], [], []>} : vector<2x32xf32>, vector<32x128xf32>, vector<2x128xf32> -> vector<2x128xf32>
    %105 = arith.addf %103, %104 : vector<2x128xf32>
    %106 = vector.extract_strided_slice %105 {offsets = [0, 0], sizes = [2, 32], strides = [1, 1]} : vector<2x128xf32> to vector<2x32xf32>
    %107 = arith.negf %106 : vector<2x32xf32>
    %108 = math.exp %107 : vector<2x32xf32>
    %cst_36 = arith.constant 1.000000e+00 : f32
    %109 = vector.broadcast %cst_36 : f32 to vector<2x32xf32>
    %110 = arith.addf %109, %108 : vector<2x32xf32>
    %111 = arith.divf %109, %110 : vector<2x32xf32>
    %112 = vector.extract_strided_slice %105 {offsets = [0, 32], sizes = [2, 32], strides = [1, 1]} : vector<2x128xf32> to vector<2x32xf32>
    %113 = arith.negf %112 : vector<2x32xf32>
    %114 = math.exp %113 : vector<2x32xf32>
    %cst_37 = arith.constant 1.000000e+00 : f32
    %115 = vector.broadcast %cst_37 : f32 to vector<2x32xf32>
    %116 = arith.addf %115, %114 : vector<2x32xf32>
    %117 = arith.divf %115, %116 : vector<2x32xf32>
    %118 = vector.extract_strided_slice %105 {offsets = [0, 64], sizes = [2, 32], strides = [1, 1]} : vector<2x128xf32> to vector<2x32xf32>
    %119 = math.tanh %118 : vector<2x32xf32>
    %120 = vector.extract_strided_slice %105 {offsets = [0, 96], sizes = [2, 32], strides = [1, 1]} : vector<2x128xf32> to vector<2x32xf32>
    %121 = arith.negf %120 : vector<2x32xf32>
    %122 = math.exp %121 : vector<2x32xf32>
    %cst_38 = arith.constant 1.000000e+00 : f32
    %123 = vector.broadcast %cst_38 : f32 to vector<2x32xf32>
    %124 = arith.addf %123, %122 : vector<2x32xf32>
    %125 = arith.divf %123, %124 : vector<2x32xf32>
    %126 = arith.mulf %117, %96 : vector<2x32xf32>
    %127 = arith.mulf %111, %119 : vector<2x32xf32>
    %128 = arith.addf %126, %127 : vector<2x32xf32>
    %129 = math.tanh %128 : vector<2x32xf32>
    %130 = arith.mulf %125, %129 : vector<2x32xf32>
    %c3_39 = arith.constant 3 : index
    %c0_40 = arith.constant 0 : index
    %c0_41 = arith.constant 0 : index
    %131 = vector.load %arg3[%c3_39, %c0_40, %c0_41] : memref<8x2x32xf32, #tpu.memory_space<vmem>>, vector<1x2x32xf32>
    %132 = vector.shape_cast %131 : vector<1x2x32xf32> to vector<2x32xf32>
    %133 = vector.shape_cast %130 : vector<2x32xf32> to vector<1x2x32xf32>
    tpu.vector_store %arg3[%c3_39, %c0_40, %c0_41], %133 {strides = array<i32>} : memref<8x2x32xf32, #tpu.memory_space<vmem>>, vector<1x2x32xf32>,
    %c4 = arith.constant 4 : index
    %c0_42 = arith.constant 0 : index
    %c0_43 = arith.constant 0 : index
    %134 = vector.load %arg1[%c4, %c0_42, %c0_43] : memref<8x2x128xf32, #tpu.memory_space<vmem>>, vector<1x2x128xf32>
    %135 = vector.shape_cast %134 : vector<1x2x128xf32> to vector<2x128xf32>
    %cst_44 = arith.constant dense<0.000000e+00> : vector<2x128xf32>
    %136 = tpu.matmul %130, %3, %cst_44 {dimension_numbers = #tpu.dot_dimension_numbers<[1], [0], [0], [1], [0, 0, 1, 1], [], []>} : vector<2x32xf32>, vector<32x128xf32>, vector<2x128xf32> -> vector<2x128xf32>
    %137 = arith.addf %135, %136 : vector<2x128xf32>
    %138 = vector.extract_strided_slice %137 {offsets = [0, 0], sizes = [2, 32], strides = [1, 1]} : vector<2x128xf32> to vector<2x32xf32>
    %139 = arith.negf %138 : vector<2x32xf32>
    %140 = math.exp %139 : vector<2x32xf32>
    %cst_45 = arith.constant 1.000000e+00 : f32
    %141 = vector.broadcast %cst_45 : f32 to vector<2x32xf32>
    %142 = arith.addf %141, %140 : vector<2x32xf32>
    %143 = arith.divf %141, %142 : vector<2x32xf32>
    %144 = vector.extract_strided_slice %137 {offsets = [0, 32], sizes = [2, 32], strides = [1, 1]} : vector<2x128xf32> to vector<2x32xf32>
    %145 = arith.negf %144 : vector<2x32xf32>
    %146 = math.exp %145 : vector<2x32xf32>
    %cst_46 = arith.constant 1.000000e+00 : f32
    %147 = vector.broadcast %cst_46 : f32 to vector<2x32xf32>
    %148 = arith.addf %147, %146 : vector<2x32xf32>
    %149 = arith.divf %147, %148 : vector<2x32xf32>
    %150 = vector.extract_strided_slice %137 {offsets = [0, 64], sizes = [2, 32], strides = [1, 1]} : vector<2x128xf32> to vector<2x32xf32>
    %151 = math.tanh %150 : vector<2x32xf32>
    %152 = vector.extract_strided_slice %137 {offsets = [0, 96], sizes = [2, 32], strides = [1, 1]} : vector<2x128xf32> to vector<2x32xf32>
    %153 = arith.negf %152 : vector<2x32xf32>
    %154 = math.exp %153 : vector<2x32xf32>
    %cst_47 = arith.constant 1.000000e+00 : f32
    %155 = vector.broadcast %cst_47 : f32 to vector<2x32xf32>
    %156 = arith.addf %155, %154 : vector<2x32xf32>
    %157 = arith.divf %155, %156 : vector<2x32xf32>
    %158 = arith.mulf %149, %128 : vector<2x32xf32>
    %159 = arith.mulf %143, %151 : vector<2x32xf32>
    %160 = arith.addf %158, %159 : vector<2x32xf32>
    %161 = math.tanh %160 : vector<2x32xf32>
    %162 = arith.mulf %157, %161 : vector<2x32xf32>
    %c4_48 = arith.constant 4 : index
    %c0_49 = arith.constant 0 : index
    %c0_50 = arith.constant 0 : index
    %163 = vector.load %arg3[%c4_48, %c0_49, %c0_50] : memref<8x2x32xf32, #tpu.memory_space<vmem>>, vector<1x2x32xf32>
    %164 = vector.shape_cast %163 : vector<1x2x32xf32> to vector<2x32xf32>
    %165 = vector.shape_cast %162 : vector<2x32xf32> to vector<1x2x32xf32>
    tpu.vector_store %arg3[%c4_48, %c0_49, %c0_50], %165 {strides = array<i32>} : memref<8x2x32xf32, #tpu.memory_space<vmem>>, vector<1x2x32xf32>,
    %c5 = arith.constant 5 : index
    %c0_51 = arith.constant 0 : index
    %c0_52 = arith.constant 0 : index
    %166 = vector.load %arg1[%c5, %c0_51, %c0_52] : memref<8x2x128xf32, #tpu.memory_space<vmem>>, vector<1x2x128xf32>
    %167 = vector.shape_cast %166 : vector<1x2x128xf32> to vector<2x128xf32>
    %cst_53 = arith.constant dense<0.000000e+00> : vector<2x128xf32>
    %168 = tpu.matmul %162, %3, %cst_53 {dimension_numbers = #tpu.dot_dimension_numbers<[1], [0], [0], [1], [0, 0, 1, 1], [], []>} : vector<2x32xf32>, vector<32x128xf32>, vector<2x128xf32> -> vector<2x128xf32>
    %169 = arith.addf %167, %168 : vector<2x128xf32>
    %170 = vector.extract_strided_slice %169 {offsets = [0, 0], sizes = [2, 32], strides = [1, 1]} : vector<2x128xf32> to vector<2x32xf32>
    %171 = arith.negf %170 : vector<2x32xf32>
    %172 = math.exp %171 : vector<2x32xf32>
    %cst_54 = arith.constant 1.000000e+00 : f32
    %173 = vector.broadcast %cst_54 : f32 to vector<2x32xf32>
    %174 = arith.addf %173, %172 : vector<2x32xf32>
    %175 = arith.divf %173, %174 : vector<2x32xf32>
    %176 = vector.extract_strided_slice %169 {offsets = [0, 32], sizes = [2, 32], strides = [1, 1]} : vector<2x128xf32> to vector<2x32xf32>
    %177 = arith.negf %176 : vector<2x32xf32>
    %178 = math.exp %177 : vector<2x32xf32>
    %cst_55 = arith.constant 1.000000e+00 : f32
    %179 = vector.broadcast %cst_55 : f32 to vector<2x32xf32>
    %180 = arith.addf %179, %178 : vector<2x32xf32>
    %181 = arith.divf %179, %180 : vector<2x32xf32>
    %182 = vector.extract_strided_slice %169 {offsets = [0, 64], sizes = [2, 32], strides = [1, 1]} : vector<2x128xf32> to vector<2x32xf32>
    %183 = math.tanh %182 : vector<2x32xf32>
    %184 = vector.extract_strided_slice %169 {offsets = [0, 96], sizes = [2, 32], strides = [1, 1]} : vector<2x128xf32> to vector<2x32xf32>
    %185 = arith.negf %184 : vector<2x32xf32>
    %186 = math.exp %185 : vector<2x32xf32>
    %cst_56 = arith.constant 1.000000e+00 : f32
    %187 = vector.broadcast %cst_56 : f32 to vector<2x32xf32>
    %188 = arith.addf %187, %186 : vector<2x32xf32>
    %189 = arith.divf %187, %188 : vector<2x32xf32>
    %190 = arith.mulf %181, %160 : vector<2x32xf32>
    %191 = arith.mulf %175, %183 : vector<2x32xf32>
    %192 = arith.addf %190, %191 : vector<2x32xf32>
    %193 = math.tanh %192 : vector<2x32xf32>
    %194 = arith.mulf %189, %193 : vector<2x32xf32>
    %c5_57 = arith.constant 5 : index
    %c0_58 = arith.constant 0 : index
    %c0_59 = arith.constant 0 : index
    %195 = vector.load %arg3[%c5_57, %c0_58, %c0_59] : memref<8x2x32xf32, #tpu.memory_space<vmem>>, vector<1x2x32xf32>
    %196 = vector.shape_cast %195 : vector<1x2x32xf32> to vector<2x32xf32>
    %197 = vector.shape_cast %194 : vector<2x32xf32> to vector<1x2x32xf32>
    tpu.vector_store %arg3[%c5_57, %c0_58, %c0_59], %197 {strides = array<i32>} : memref<8x2x32xf32, #tpu.memory_space<vmem>>, vector<1x2x32xf32>,
    %c6 = arith.constant 6 : index
    %c0_60 = arith.constant 0 : index
    %c0_61 = arith.constant 0 : index
    %198 = vector.load %arg1[%c6, %c0_60, %c0_61] : memref<8x2x128xf32, #tpu.memory_space<vmem>>, vector<1x2x128xf32>
    %199 = vector.shape_cast %198 : vector<1x2x128xf32> to vector<2x128xf32>
    %cst_62 = arith.constant dense<0.000000e+00> : vector<2x128xf32>
    %200 = tpu.matmul %194, %3, %cst_62 {dimension_numbers = #tpu.dot_dimension_numbers<[1], [0], [0], [1], [0, 0, 1, 1], [], []>} : vector<2x32xf32>, vector<32x128xf32>, vector<2x128xf32> -> vector<2x128xf32>
    %201 = arith.addf %199, %200 : vector<2x128xf32>
    %202 = vector.extract_strided_slice %201 {offsets = [0, 0], sizes = [2, 32], strides = [1, 1]} : vector<2x128xf32> to vector<2x32xf32>
    %203 = arith.negf %202 : vector<2x32xf32>
    %204 = math.exp %203 : vector<2x32xf32>
    %cst_63 = arith.constant 1.000000e+00 : f32
    %205 = vector.broadcast %cst_63 : f32 to vector<2x32xf32>
    %206 = arith.addf %205, %204 : vector<2x32xf32>
    %207 = arith.divf %205, %206 : vector<2x32xf32>
    %208 = vector.extract_strided_slice %201 {offsets = [0, 32], sizes = [2, 32], strides = [1, 1]} : vector<2x128xf32> to vector<2x32xf32>
    %209 = arith.negf %208 : vector<2x32xf32>
    %210 = math.exp %209 : vector<2x32xf32>
    %cst_64 = arith.constant 1.000000e+00 : f32
    %211 = vector.broadcast %cst_64 : f32 to vector<2x32xf32>
    %212 = arith.addf %211, %210 : vector<2x32xf32>
    %213 = arith.divf %211, %212 : vector<2x32xf32>
    %214 = vector.extract_strided_slice %201 {offsets = [0, 64], sizes = [2, 32], strides = [1, 1]} : vector<2x128xf32> to vector<2x32xf32>
    %215 = math.tanh %214 : vector<2x32xf32>
    %216 = vector.extract_strided_slice %201 {offsets = [0, 96], sizes = [2, 32], strides = [1, 1]} : vector<2x128xf32> to vector<2x32xf32>
    %217 = arith.negf %216 : vector<2x32xf32>
    %218 = math.exp %217 : vector<2x32xf32>
    %cst_65 = arith.constant 1.000000e+00 : f32
    %219 = vector.broadcast %cst_65 : f32 to vector<2x32xf32>
    %220 = arith.addf %219, %218 : vector<2x32xf32>
    %221 = arith.divf %219, %220 : vector<2x32xf32>
    %222 = arith.mulf %213, %192 : vector<2x32xf32>
    %223 = arith.mulf %207, %215 : vector<2x32xf32>
    %224 = arith.addf %222, %223 : vector<2x32xf32>
    %225 = math.tanh %224 : vector<2x32xf32>
    %226 = arith.mulf %221, %225 : vector<2x32xf32>
    %c6_66 = arith.constant 6 : index
    %c0_67 = arith.constant 0 : index
    %c0_68 = arith.constant 0 : index
    %227 = vector.load %arg3[%c6_66, %c0_67, %c0_68] : memref<8x2x32xf32, #tpu.memory_space<vmem>>, vector<1x2x32xf32>
    %228 = vector.shape_cast %227 : vector<1x2x32xf32> to vector<2x32xf32>
    %229 = vector.shape_cast %226 : vector<2x32xf32> to vector<1x2x32xf32>
    tpu.vector_store %arg3[%c6_66, %c0_67, %c0_68], %229 {strides = array<i32>} : memref<8x2x32xf32, #tpu.memory_space<vmem>>, vector<1x2x32xf32>,
    %c7 = arith.constant 7 : index
    %c0_69 = arith.constant 0 : index
    %c0_70 = arith.constant 0 : index
    %230 = vector.load %arg1[%c7, %c0_69, %c0_70] : memref<8x2x128xf32, #tpu.memory_space<vmem>>, vector<1x2x128xf32>
    %231 = vector.shape_cast %230 : vector<1x2x128xf32> to vector<2x128xf32>
    %cst_71 = arith.constant dense<0.000000e+00> : vector<2x128xf32>
    %232 = tpu.matmul %226, %3, %cst_71 {dimension_numbers = #tpu.dot_dimension_numbers<[1], [0], [0], [1], [0, 0, 1, 1], [], []>} : vector<2x32xf32>, vector<32x128xf32>, vector<2x128xf32> -> vector<2x128xf32>
    %233 = arith.addf %231, %232 : vector<2x128xf32>
    %234 = vector.extract_strided_slice %233 {offsets = [0, 0], sizes = [2, 32], strides = [1, 1]} : vector<2x128xf32> to vector<2x32xf32>
    %235 = arith.negf %234 : vector<2x32xf32>
    %236 = math.exp %235 : vector<2x32xf32>
    %cst_72 = arith.constant 1.000000e+00 : f32
    %237 = vector.broadcast %cst_72 : f32 to vector<2x32xf32>
    %238 = arith.addf %237, %236 : vector<2x32xf32>
    %239 = arith.divf %237, %238 : vector<2x32xf32>
    %240 = vector.extract_strided_slice %233 {offsets = [0, 32], sizes = [2, 32], strides = [1, 1]} : vector<2x128xf32> to vector<2x32xf32>
    %241 = arith.negf %240 : vector<2x32xf32>
    %242 = math.exp %241 : vector<2x32xf32>
    %cst_73 = arith.constant 1.000000e+00 : f32
    %243 = vector.broadcast %cst_73 : f32 to vector<2x32xf32>
    %244 = arith.addf %243, %242 : vector<2x32xf32>
    %245 = arith.divf %243, %244 : vector<2x32xf32>
    %246 = vector.extract_strided_slice %233 {offsets = [0, 64], sizes = [2, 32], strides = [1, 1]} : vector<2x128xf32> to vector<2x32xf32>
    %247 = math.tanh %246 : vector<2x32xf32>
    %248 = vector.extract_strided_slice %233 {offsets = [0, 96], sizes = [2, 32], strides = [1, 1]} : vector<2x128xf32> to vector<2x32xf32>
    %249 = arith.negf %248 : vector<2x32xf32>
    %250 = math.exp %249 : vector<2x32xf32>
    %cst_74 = arith.constant 1.000000e+00 : f32
    %251 = vector.broadcast %cst_74 : f32 to vector<2x32xf32>
    %252 = arith.addf %251, %250 : vector<2x32xf32>
    %253 = arith.divf %251, %252 : vector<2x32xf32>
    %254 = arith.mulf %245, %224 : vector<2x32xf32>
    %255 = arith.mulf %239, %247 : vector<2x32xf32>
    %256 = arith.addf %254, %255 : vector<2x32xf32>
    %257 = math.tanh %256 : vector<2x32xf32>
    %258 = arith.mulf %253, %257 : vector<2x32xf32>
    %c7_75 = arith.constant 7 : index
    %c0_76 = arith.constant 0 : index
    %c0_77 = arith.constant 0 : index
    %259 = vector.load %arg3[%c7_75, %c0_76, %c0_77] : memref<8x2x32xf32, #tpu.memory_space<vmem>>, vector<1x2x32xf32>
    %260 = vector.shape_cast %259 : vector<1x2x32xf32> to vector<2x32xf32>
    %261 = vector.shape_cast %258 : vector<2x32xf32> to vector<1x2x32xf32>
    tpu.vector_store %arg3[%c7_75, %c0_76, %c0_77], %261 {strides = array<i32>} : memref<8x2x32xf32, #tpu.memory_space<vmem>>, vector<1x2x32xf32>,
    %c0_78 = arith.constant 0 : index
    %c0_79 = arith.constant 0 : index
    %262 = vector.load %arg4[%c0_78, %c0_79] : memref<2x32xf32, #tpu.memory_space<vmem>>, vector<2x32xf32>
    tpu.vector_store %arg4[%c0_78, %c0_79], %258 {strides = array<i32>} : memref<2x32xf32, #tpu.memory_space<vmem>>, vector<2x32xf32>,
    %c0_80 = arith.constant 0 : index
    %c0_81 = arith.constant 0 : index
    %263 = vector.load %arg5[%c0_80, %c0_81] : memref<2x32xf32, #tpu.memory_space<vmem>>, vector<2x32xf32>
    tpu.vector_store %arg5[%c0_80, %c0_81], %256 {strides = array<i32>} : memref<2x32xf32, #tpu.memory_space<vmem>>, vector<2x32xf32>,
    return
  }
  func.func @transform_0(%arg0: i32) -> (i32, i32, i32) {
    %c0_i32 = arith.constant 0 : i32
    %c0_i32_0 = arith.constant 0 : i32
    %c0_i32_1 = arith.constant 0 : i32
    return %arg0, %c0_i32, %c0_i32_0 : i32, i32, i32
  }
  func.func @transform_1(%arg0: i32) -> (i32, i32) {
    %c0_i32 = arith.constant 0 : i32
    %c0_i32_0 = arith.constant 0 : i32
    %c0_i32_1 = arith.constant 0 : i32
    return %c0_i32, %c0_i32_0 : i32, i32
  }
  func.func @transform_2(%arg0: i32) -> (i32, i32, i32) {
    %c0_i32 = arith.constant 0 : i32
    %c0_i32_0 = arith.constant 0 : i32
    %c0_i32_1 = arith.constant 0 : i32
    return %arg0, %c0_i32, %c0_i32_0 : i32, i32, i32
  }
}

module attributes {stable_mosaic.version = 11 : i64} {
  func.func @_linear_kernel(%arg0: i32, %arg1: memref<16x32xf32, #tpu.memory_space<vmem>>, %arg2: memref<32x128xf32, #tpu.memory_space<vmem>>, %arg3: memref<1x128xf32, #tpu.memory_space<vmem>>, %arg4: memref<16x128xf32, #tpu.memory_space<vmem>>) attributes {dimension_semantics = [#tpu.dimension_semantics<parallel>], iteration_bounds = array<i64: 1>, scalar_prefetch = 0 : i64, scratch_operands = 0 : i64, tpu.core_type = #tpu.core_type<tc>, window_params = [{transform_indices = @transform_0, window_bounds = array<i64: 16, 32>}, {pipeline_mode = #tpu.pipeline_mode<synchronous>, transform_indices = @transform_1, window_bounds = array<i64: 32, 128>}, {pipeline_mode = #tpu.pipeline_mode<synchronous>, transform_indices = @transform_2, window_bounds = array<i64: 1, 128>}, {transform_indices = @transform_3, window_bounds = array<i64: 16, 128>}]} {
    %c0 = arith.constant 0 : index
    %c0_0 = arith.constant 0 : index
    %0 = vector.load %arg1[%c0, %c0_0] : memref<16x32xf32, #tpu.memory_space<vmem>>, vector<16x32xf32>
    %c0_1 = arith.constant 0 : index
    %c0_2 = arith.constant 0 : index
    %1 = vector.load %arg2[%c0_1, %c0_2] : memref<32x128xf32, #tpu.memory_space<vmem>>, vector<32x128xf32>
    %cst = arith.constant dense<0.000000e+00> : vector<16x128xf32>
    %2 = tpu.matmul %0, %1, %cst {dimension_numbers = #tpu.dot_dimension_numbers<[1], [0], [0], [1], [0, 0, 1, 1], [], []>} : vector<16x32xf32>, vector<32x128xf32>, vector<16x128xf32> -> vector<16x128xf32>
    %c0_3 = arith.constant 0 : index
    %c0_4 = arith.constant 0 : index
    %3 = vector.load %arg3[%c0_3, %c0_4] : memref<1x128xf32, #tpu.memory_space<vmem>>, vector<1x128xf32>
    %4 = vector.broadcast %3 : vector<1x128xf32> to vector<16x128xf32>
    %5 = arith.addf %2, %4 : vector<16x128xf32>
    %c0_5 = arith.constant 0 : index
    %c0_6 = arith.constant 0 : index
    %6 = vector.load %arg4[%c0_5, %c0_6] : memref<16x128xf32, #tpu.memory_space<vmem>>, vector<16x128xf32>
    tpu.vector_store %arg4[%c0_5, %c0_6], %5 {strides = array<i32>} : memref<16x128xf32, #tpu.memory_space<vmem>>, vector<16x128xf32>,
    return
  }
  func.func @transform_0(%arg0: i32) -> (i32, i32) {
    %c0_i32 = arith.constant 0 : i32
    %c0_i32_0 = arith.constant 0 : i32
    return %arg0, %c0_i32 : i32, i32
  }
  func.func @transform_1(%arg0: i32) -> (i32, i32) {
    %c0_i32 = arith.constant 0 : i32
    %c0_i32_0 = arith.constant 0 : i32
    %c0_i32_1 = arith.constant 0 : i32
    return %c0_i32, %c0_i32_0 : i32, i32
  }
  func.func @transform_2(%arg0: i32) -> (i32, i32) {
    %c0_i32 = arith.constant 0 : i32
    %c0_i32_0 = arith.constant 0 : i32
    %c0_i32_1 = arith.constant 0 : i32
    return %c0_i32, %c0_i32_0 : i32, i32
  }
  func.func @transform_3(%arg0: i32) -> (i32, i32) {
    %c0_i32 = arith.constant 0 : i32
    %c0_i32_0 = arith.constant 0 : i32
    return %arg0, %c0_i32 : i32, i32
  }
}

module attributes {stable_mosaic.version = 11 : i64} {
  func.func @_fusion_kernel(%arg0: i32, %arg1: memref<16x32xf32, #tpu.memory_space<vmem>>, %arg2: memref<16x16xf32, #tpu.memory_space<vmem>>, %arg3: memref<32x32xf32, #tpu.memory_space<vmem>>, %arg4: memref<16x32xf32, #tpu.memory_space<vmem>>, %arg5: memref<1x32xf32, #tpu.memory_space<vmem>>, %arg6: memref<16x32xf32, #tpu.memory_space<vmem>>) attributes {dimension_semantics = [#tpu.dimension_semantics<parallel>], iteration_bounds = array<i64: 1>, scalar_prefetch = 0 : i64, scratch_operands = 0 : i64, tpu.core_type = #tpu.core_type<tc>, window_params = [{transform_indices = @transform_0, window_bounds = array<i64: 16, 32>}, {transform_indices = @transform_1, window_bounds = array<i64: 16, 16>}, {pipeline_mode = #tpu.pipeline_mode<synchronous>, transform_indices = @transform_2, window_bounds = array<i64: 32, 32>}, {pipeline_mode = #tpu.pipeline_mode<synchronous>, transform_indices = @transform_3, window_bounds = array<i64: 16, 32>}, {pipeline_mode = #tpu.pipeline_mode<synchronous>, transform_indices = @transform_4, window_bounds = array<i64: 1, 32>}, {transform_indices = @transform_5, window_bounds = array<i64: 16, 32>}]} {
    %c0 = arith.constant 0 : index
    %c0_0 = arith.constant 0 : index
    %0 = vector.load %arg1[%c0, %c0_0] : memref<16x32xf32, #tpu.memory_space<vmem>>, vector<16x32xf32>
    %c0_1 = arith.constant 0 : index
    %c0_2 = arith.constant 0 : index
    %1 = vector.load %arg3[%c0_1, %c0_2] : memref<32x32xf32, #tpu.memory_space<vmem>>, vector<32x32xf32>
    %cst = arith.constant dense<0.000000e+00> : vector<16x32xf32>
    %2 = tpu.matmul %0, %1, %cst {dimension_numbers = #tpu.dot_dimension_numbers<[1], [0], [0], [1], [0, 0, 1, 1], [], []>} : vector<16x32xf32>, vector<32x32xf32>, vector<16x32xf32> -> vector<16x32xf32>
    %c0_3 = arith.constant 0 : index
    %c0_4 = arith.constant 0 : index
    %3 = vector.load %arg2[%c0_3, %c0_4] : memref<16x16xf32, #tpu.memory_space<vmem>>, vector<16x16xf32>
    %c0_5 = arith.constant 0 : index
    %c0_6 = arith.constant 0 : index
    %4 = vector.load %arg4[%c0_5, %c0_6] : memref<16x32xf32, #tpu.memory_space<vmem>>, vector<16x32xf32>
    %cst_7 = arith.constant dense<0.000000e+00> : vector<16x32xf32>
    %5 = tpu.matmul %3, %4, %cst_7 {dimension_numbers = #tpu.dot_dimension_numbers<[1], [0], [0], [1], [0, 0, 1, 1], [], []>} : vector<16x16xf32>, vector<16x32xf32>, vector<16x32xf32> -> vector<16x32xf32>
    %6 = arith.addf %2, %5 : vector<16x32xf32>
    %c0_8 = arith.constant 0 : index
    %c0_9 = arith.constant 0 : index
    %7 = vector.load %arg5[%c0_8, %c0_9] : memref<1x32xf32, #tpu.memory_space<vmem>>, vector<1x32xf32>
    %8 = vector.broadcast %7 : vector<1x32xf32> to vector<16x32xf32>
    %9 = arith.addf %6, %8 : vector<16x32xf32>
    %c0_10 = arith.constant 0 : index
    %c0_11 = arith.constant 0 : index
    %10 = vector.load %arg6[%c0_10, %c0_11] : memref<16x32xf32, #tpu.memory_space<vmem>>, vector<16x32xf32>
    tpu.vector_store %arg6[%c0_10, %c0_11], %9 {strides = array<i32>} : memref<16x32xf32, #tpu.memory_space<vmem>>, vector<16x32xf32>,
    return
  }
  func.func @transform_0(%arg0: i32) -> (i32, i32) {
    %c0_i32 = arith.constant 0 : i32
    %c0_i32_0 = arith.constant 0 : i32
    return %arg0, %c0_i32 : i32, i32
  }
  func.func @transform_1(%arg0: i32) -> (i32, i32) {
    %c0_i32 = arith.constant 0 : i32
    %c0_i32_0 = arith.constant 0 : i32
    return %arg0, %c0_i32 : i32, i32
  }
  func.func @transform_2(%arg0: i32) -> (i32, i32) {
    %c0_i32 = arith.constant 0 : i32
    %c0_i32_0 = arith.constant 0 : i32
    %c0_i32_1 = arith.constant 0 : i32
    return %c0_i32, %c0_i32_0 : i32, i32
  }
  func.func @transform_3(%arg0: i32) -> (i32, i32) {
    %c0_i32 = arith.constant 0 : i32
    %c0_i32_0 = arith.constant 0 : i32
    %c0_i32_1 = arith.constant 0 : i32
    return %c0_i32, %c0_i32_0 : i32, i32
  }
  func.func @transform_4(%arg0: i32) -> (i32, i32) {
    %c0_i32 = arith.constant 0 : i32
    %c0_i32_0 = arith.constant 0 : i32
    %c0_i32_1 = arith.constant 0 : i32
    return %c0_i32, %c0_i32_0 : i32, i32
  }
  func.func @transform_5(%arg0: i32) -> (i32, i32) {
    %c0_i32 = arith.constant 0 : i32
    %c0_i32_0 = arith.constant 0 : i32
    return %arg0, %c0_i32 : i32, i32
  }
}

</mosaic_0001>

<llo_original>
// kernel: multiscale_lstm_forward.7
$region0: #{multiscale_lstm_forward.7}
  #allocation0 [shape = 'u32[]', space=smem, size = 0x4, offset = 0x4, fixed_abs, tag = 'smem constant byte address 0x4 - core index']
  #allocation1 [shape = 'u32[72,128]{1,0:T(1,128)}', space=vmem, size = 0x9000, scoped, tag = 'internal scratch']
  %s0 = inlined_call_operand.vmem [shape: f32[16,4], index: 0, kind: input, shape index: {}]
  %s1 = inlined_call_operand.vmem [shape: f32[4,128], index: 1, kind: input, shape index: {}]
  %s2 = inlined_call_operand.vmem [shape: f32[1,128], index: 2, kind: input, shape index: {}]
  %s3 = inlined_call_operand.vmem [shape: f32[16,128], index: 3, kind: output, shape index: {}]
  %s4 = sld [smem:[#allocation0]]
  $region22: #{multiscale_lstm_forward.7} parent=0
    _
  %s6 = ssub.s32 1, %s4
  %s7 = scalar_select 0, %s6, %s4
  // Predicated region
  $region2: #{multiscale_lstm_forward.7} parent=0 // pred_check
    _
  $region3: #{multiscale_lstm_forward.7} parent=0 // pred_check_branch
    %9 = sbr.rel (0) target = $region5
  $region4: #{multiscale_lstm_forward.7} parent=0 // pred_region
    _
  $region5: #{multiscale_lstm_forward.7} parent=0 // pred_fallthru
    _
  // Predicated region
  $region6: #{multiscale_lstm_forward.7} parent=0 // pred_check
    _
  $region7: #{multiscale_lstm_forward.7} parent=0 // pred_check_branch
    %11 = sbr.rel (0) target = $region9
  $region8: #{multiscale_lstm_forward.7} parent=0 // pred_region
    _
  $region9: #{multiscale_lstm_forward.7} parent=0 // pred_fallthru
    _
  // Predicated region
  $region10: #{multiscale_lstm_forward.7} parent=0 // pred_check
    _
  $region11: #{multiscale_lstm_forward.7} parent=0 // pred_check_branch
    %13 = sbr.rel (0) target = $region13
  $region12: #{multiscale_lstm_forward.7} parent=0 // pred_region
    _
  $region13: #{multiscale_lstm_forward.7} parent=0 // pred_fallthru
    _
  %v14 = vld [vmem:[%s0] sm:$0xff]
  %v15 = vld [vmem:[%s0 + $0x8] sm:$0xff]
  %v16 = vld [vmem:[%s1] sm:$0xf]
  %v17 = vld [vmem:[%s2] sm:$0x1]
  %v19 = vperm.slane %v17, 0
  %vm21 = vcmask 31744
  %v23 = vsel %vm21, %v14, 0
  %v26 = vsel %vm21, %v15, 0
  %vm28 = vcmask 1043456
  %v30 = vsel %vm28, %v16, 0
  %32 = vmatpush.msra.mxu0 0.0
  %33 = vmatpush.msra.mxu0 0.0
  %34 = vmatpush.msra.mxu0 0.0
  %35 = vmatpush.msra.mxu0 0.0
  %36 = vmatpush.msra.mxu0 0.0
  %37 = vmatpush.msra.mxu0 0.0
  %38 = vmatpush.msra.mxu0 0.0
  %39 = vmatpush.msra.mxu0 0.0
  %40 = vmatpush.msra.mxu0 0.0
  %41 = vmatpush.msra.mxu0 0.0
  %42 = vmatpush.msra.mxu0 0.0
  %43 = vmatpush.msra.mxu0 0.0
  %44 = vmatpush.msra.mxu0 0.0
  %45 = vmatpush.msra.mxu0 0.0
  %46 = vmatpush.msra.mxu0 0.0
  %47 = vmatpush.msra.mxu0 %v30
  %48 = vmatmul.f32.gmra.mxu0 %v23
  %v49 = vpop.f32.mrf.mxu0
  %v50 = vadd.f32 %v19, %v49
  %51 = vmatmul.f32.gmra.mxu0 %v26
  %v52 = vpop.f32.mrf.mxu0
  %v53 = vadd.f32 %v19, %v52
  %54 = vdwg.mxu0
  %55 = vst [vmem:[%s3] sm:$0xff] %v50
  %56 = vst [vmem:[%s3 + $0x8] sm:$0xff] %v53
  // Predicated region
  $region14: #{multiscale_lstm_forward.7} parent=0 // pred_check
    _
  $region15: #{multiscale_lstm_forward.7} parent=0 // pred_check_branch
    %58 = sbr.rel (0) target = $region17
  $region16: #{multiscale_lstm_forward.7} parent=0 // pred_region
    _
  $region17: #{multiscale_lstm_forward.7} parent=0 // pred_fallthru
    _
  // Predicated region
  $region18: #{multiscale_lstm_forward.7} parent=0 // pred_check
    _
  $region19: #{multiscale_lstm_forward.7} parent=0 // pred_check_branch
    %60 = sbr.rel (0) target = $region21
  $region20: #{multiscale_lstm_forward.7} parent=0 // pred_region
    _
  $region21: #{multiscale_lstm_forward.7} parent=0 // pred_fallthru
    _

// kernel: multiscale_lstm_forward.11
$region0: #{multiscale_lstm_forward.11}
  #allocation0 [shape = 'u32[]', space=smem, size = 0x4, offset = 0x4, fixed_abs, tag = 'smem constant byte address 0x4 - core index']
  #allocation1 [shape = 'u32[72,128]{1,0:T(1,128)}', space=vmem, size = 0x9000, scoped, tag = 'internal scratch']
  %s0 = inlined_call_operand.vmem [shape: f32[8,4], index: 0, kind: input, shape index: {}]
  %s1 = inlined_call_operand.vmem [shape: f32[4,64], index: 1, kind: input, shape index: {}]
  %s2 = inlined_call_operand.vmem [shape: f32[1,64], index: 2, kind: input, shape index: {}]
  %s3 = inlined_call_operand.vmem [shape: f32[8,64], index: 3, kind: output, shape index: {}]
  %s4 = sld [smem:[#allocation0]]
  $region22: #{multiscale_lstm_forward.11} parent=0
    _
  %s6 = ssub.s32 1, %s4
  %s7 = scalar_select 0, %s6, %s4
  // Predicated region
  $region2: #{multiscale_lstm_forward.11} parent=0 // pred_check
    _
  $region3: #{multiscale_lstm_forward.11} parent=0 // pred_check_branch
    %9 = sbr.rel (0) target = $region5
  $region4: #{multiscale_lstm_forward.11} parent=0 // pred_region
    _
  $region5: #{multiscale_lstm_forward.11} parent=0 // pred_fallthru
    _
  // Predicated region
  $region6: #{multiscale_lstm_forward.11} parent=0 // pred_check
    _
  $region7: #{multiscale_lstm_forward.11} parent=0 // pred_check_branch
    %11 = sbr.rel (0) target = $region9
  $region8: #{multiscale_lstm_forward.11} parent=0 // pred_region
    _
  $region9: #{multiscale_lstm_forward.11} parent=0 // pred_fallthru
    _
  // Predicated region
  $region10: #{multiscale_lstm_forward.11} parent=0 // pred_check
    _
  $region11: #{multiscale_lstm_forward.11} parent=0 // pred_check_branch
    %13 = sbr.rel (0) target = $region13
  $region12: #{multiscale_lstm_forward.11} parent=0 // pred_region
    _
  $region13: #{multiscale_lstm_forward.11} parent=0 // pred_fallthru
    _
  %v14 = vld [vmem:[%s0] sm:$0xff]
  %v15 = vld [vmem:[%s1] sm:$0xf]
  %v16 = vld [vmem:[%s2] sm:$0x1]
  %v18 = vperm.slane %v16, 0
  %vm20 = vcmask 31744
  %v22 = vsel %vm20, %v14, 0
  %vm24 = vcmask 1043456
  %v26 = vsel %vm24, %v15, 0
  %28 = vmatpush.msra.mxu0 0.0
  %29 = vmatpush.msra.mxu0 0.0
  %30 = vmatpush.msra.mxu0 0.0
  %31 = vmatpush.msra.mxu0 0.0
  %32 = vmatpush.msra.mxu0 0.0
  %33 = vmatpush.msra.mxu0 0.0
  %34 = vmatpush.msra.mxu0 0.0
  %35 = vmatpush.msra.mxu0 0.0
  %36 = vmatpush.msra.mxu0 0.0
  %37 = vmatpush.msra.mxu0 0.0
  %38 = vmatpush.msra.mxu0 0.0
  %39 = vmatpush.msra.mxu0 0.0
  %40 = vmatpush.msra.mxu0 0.0
  %41 = vmatpush.msra.mxu0 0.0
  %42 = vmatpush.msra.mxu0 0.0
  %43 = vmatpush.msra.mxu0 %v26
  %44 = vmatmul.f32.gmra.mxu0 %v22
  %v45 = vpop.f32.mrf.mxu0
  %v46 = vadd.f32 %v18, %v45
  %47 = vdwg.mxu0
  %vm48 = vcmask 523264
  %49 = vst.msk [vmem:[%s3] sm:$0xff] %vm48, %v46
  // Predicated region
  $region14: #{multiscale_lstm_forward.11} parent=0 // pred_check
    _
  $region15: #{multiscale_lstm_forward.11} parent=0 // pred_check_branch
    %51 = sbr.rel (0) target = $region17
  $region16: #{multiscale_lstm_forward.11} parent=0 // pred_region
    _
  $region17: #{multiscale_lstm_forward.11} parent=0 // pred_fallthru
    _
  // Predicated region
  $region18: #{multiscale_lstm_forward.11} parent=0 // pred_check
    _
  $region19: #{multiscale_lstm_forward.11} parent=0 // pred_check_branch
    %53 = sbr.rel (0) target = $region21
  $region20: #{multiscale_lstm_forward.11} parent=0 // pred_region
    _
  $region21: #{multiscale_lstm_forward.11} parent=0 // pred_fallthru
    _

// kernel: multiscale_lstm_forward.12
$region0: #{multiscale_lstm_forward.12}
  #allocation0 [shape = 'u32[]', space=smem, size = 0x4, offset = 0x4, fixed_abs, tag = 'smem constant byte address 0x4 - core index']
  #allocation1 [shape = 'u32[72,128]{1,0:T(1,128)}', space=vmem, size = 0x9000, scoped, tag = 'internal scratch']
  #allocation2 [shape = 'f32[2,16]{1,0:T(2,128)}', space=vmem, size = 0x400, scoped, tag = 'scratch operand']
  #allocation3 [shape = 'f32[2,16]{1,0:T(2,128)}', space=vmem, size = 0x400, scoped, tag = 'scratch operand']
  %s0 = inlined_call_operand.vmem [shape: f32[4,2,64], index: 0, kind: input, shape index: {}]
  %s1 = inlined_call_operand.vmem [shape: f32[16,64], index: 1, kind: input, shape index: {}]
  %s2 = inlined_call_operand.vmem [shape: f32[4,2,16], index: 2, kind: output, shape index: {}]
  %s3 = sld [smem:[#allocation0]]
  $region22: #{multiscale_lstm_forward.12} parent=0
    _
  %s5 = ssub.s32 1, %s3
  %s6 = scalar_select 0, %s5, %s3
  // Predicated region
  $region2: #{multiscale_lstm_forward.12} parent=0 // pred_check
    _
  $region3: #{multiscale_lstm_forward.12} parent=0 // pred_check_branch
    %8 = sbr.rel (0) target = $region5
  $region4: #{multiscale_lstm_forward.12} parent=0 // pred_region
    _
  $region5: #{multiscale_lstm_forward.12} parent=0 // pred_fallthru
    _
  // Predicated region
  $region6: #{multiscale_lstm_forward.12} parent=0 // pred_check
    _
  $region7: #{multiscale_lstm_forward.12} parent=0 // pred_check_branch
    %10 = sbr.rel (0) target = $region9
  $region8: #{multiscale_lstm_forward.12} parent=0 // pred_region
    _
  $region9: #{multiscale_lstm_forward.12} parent=0 // pred_fallthru
    _
  %p11 = scmp.eq.s32.totalorder 0, 0
  // Predicated region
  $region10: #{multiscale_lstm_forward.12} parent=0 // pred_check
    %p12 = pneg %p11
  $region11: #{multiscale_lstm_forward.12} parent=0 // pred_check_branch
    %14 = sbr.rel (%p12) target = $region13
  $region12: #{multiscale_lstm_forward.12} parent=0 // pred_region
    %vm15 = vcmask 123904
    %16 = vst.msk [vmem:[#allocation2] sm:$0x3] %vm15, 0.0
    %17 = vst.msk [vmem:[#allocation3] sm:$0x3] %vm15, 0.0
  $region13: #{multiscale_lstm_forward.12} parent=0 // pred_fallthru
    _
  %v18 = vld [vmem:[%s1] sm:$0xff]
  %v19 = vld [vmem:[%s1 + $0x8] sm:$0xff]
  %v20 = vld [vmem:[#allocation2] sm:$0x3]
  %v21 = vld [vmem:[#allocation3] sm:$0x3]
  %v22 = vld [vmem:[%s0] sm:$0x3]
  %vm23 = vcmask 130048
  %v25 = vsel %vm23, %v20, 0
  %27 = vmatpush.msra.mxu0 0.0
  %28 = vmatpush.msra.mxu0 0.0
  %29 = vmatpush.msra.mxu0 0.0
  %30 = vmatpush.msra.mxu0 0.0
  %31 = vmatpush.msra.mxu0 0.0
  %32 = vmatpush.msra.mxu0 0.0
  %33 = vmatpush.msra.mxu0 0.0
  %34 = vmatpush.msra.mxu0 0.0
  %35 = vmatpush.msra.mxu0 0.0
  %36 = vmatpush.msra.mxu0 0.0
  %37 = vmatpush.msra.mxu0 0.0
  %38 = vmatpush.msra.mxu0 0.0
  %39 = vmatpush.msra.mxu0 0.0
  %40 = vmatpush.msra.mxu0 0.0
  %41 = vmatpush.msra.mxu0 %v19
  %42 = vmatpush.msra.mxu0 %v18
  %43 = vmatmul.f32.gmra.mxu0 %v25
  %v44 = vpop.f32.mrf.mxu0
  %v45 = vadd.f32 0.0, %v44
  %46 = vdwg.mxu0
  %v47 = vadd.f32 %v22, %v45
  %v48 = vxor.u32 %v47, 2147483648
  %v49 = vmul.f32 %v48, 1.442695
  %v50 = vpow.pop %v49
  %v51 = vadd.f32 %v50, 1.0
  %v52 = vrcp.pop %v51
  %v53 = vmul.f32 %v51, %v52
  %v54 = vsub.f32 1.0, %v53
  %v55 = vmul.f32 %v52, %v54
  %v56 = vadd.f32 %v52, %v55
  %vm57 = vweird.f32 %v51
  %vm58 = vweird.f32 %v52
  %vm59 = vmor %vm57, %vm58
  %v60 = vsel %vm59, %v52, %v56
  %v61 = vand.u32 2147483647, %v51
  %vm62 = vcmp.eq.f32.partialorder %v61, 8.507059e+37
  %v63 = vand.u32 %v51, 2147483648
  %v64 = vor.u32 1.1754944e-38, %v63
  %v65 = vsel %vm62, %v64, %v60
  %v66 = vmul.f32 1.0, %v65
  %v67 = vtanh.pop %v47
  %69 = vrot.lane.b32.xlu0 %v21, 16
  %v70 = vpop.permute.xlu0 %69
  %v72 = vmul.f32 %v66, %v70
  %74 = vrot.lane.b32.xlu0 %v67, 96
  %v75 = vpop.permute.xlu0 %74
  %v77 = vmul.f32 %v66, %v75
  %79 = vrot.lane.b32.xlu0 %v77, 16
  %v80 = vpop.permute.xlu0 %79
  %v82 = vadd.f32 %v72, %v80
  %v83 = vtanh.pop %v82
  %85 = vrot.lane.b32.xlu0 %v83, 32
  %v86 = vpop.permute.xlu0 %85
  %v88 = vmul.f32 %v66, %v86
  %90 = vrot.lane.b32.xlu0 %v88, 80
  %v91 = vpop.permute.xlu0 %90
  %vm93 = vcmask 123904
  %94 = vst.msk [vmem:[%s2] sm:$0x3] %vm93, %v91
  %s95 = scalar_lea.vmem %s0, 2
  %v96 = vld [vmem:[%s95] sm:$0x3]
  %v97 = vsel %vm23, %v91, 0
  %99 = vmatpush.msra.mxu0 0.0
  %100 = vmatpush.msra.mxu0 0.0
  %101 = vmatpush.msra.mxu0 0.0
  %102 = vmatpush.msra.mxu0 0.0
  %103 = vmatpush.msra.mxu0 0.0
  %104 = vmatpush.msra.mxu0 0.0
  %105 = vmatpush.msra.mxu0 0.0
  %106 = vmatpush.msra.mxu0 0.0
  %107 = vmatpush.msra.mxu0 0.0
  %108 = vmatpush.msra.mxu0 0.0
  %109 = vmatpush.msra.mxu0 0.0
  %110 = vmatpush.msra.mxu0 0.0
  %111 = vmatpush.msra.mxu0 0.0
  %112 = vmatpush.msra.mxu0 0.0
  %113 = vmatpush.msra.mxu0 %v19
  %114 = vmatpush.msra.mxu0 %v18
  %115 = vmatmul.f32.gmra.mxu0 %v97
  %v116 = vpop.f32.mrf.mxu0
  %v117 = vadd.f32 0.0, %v116
  %118 = vdwg.mxu0
  %v119 = vadd.f32 %v96, %v117
  %v120 = vxor.u32 %v119, 2147483648
  %v121 = vmul.f32 %v120, 1.442695
  %v122 = vpow.pop %v121
  %v123 = vadd.f32 %v122, 1.0
  %v124 = vrcp.pop %v123
  %v125 = vmul.f32 %v123, %v124
  %v126 = vsub.f32 1.0, %v125
  %v127 = vmul.f32 %v124, %v126
  %v128 = vadd.f32 %v124, %v127
  %vm129 = vweird.f32 %v123
  %vm130 = vweird.f32 %v124
  %vm131 = vmor %vm129, %vm130
  %v132 = vsel %vm131, %v124, %v128
  %v133 = vand.u32 2147483647, %v123
  %vm134 = vcmp.eq.f32.partialorder %v133, 8.507059e+37
  %v135 = vand.u32 %v123, 2147483648
  %v136 = vor.u32 1.1754944e-38, %v135
  %v137 = vsel %vm134, %v136, %v132
  %v138 = vmul.f32 1.0, %v137
  %v139 = vtanh.pop %v119
  %v140 = vmul.f32 %v138, %v82
  %142 = vrot.lane.b32.xlu0 %v139, 96
  %v143 = vpop.permute.xlu0 %142
  %v145 = vmul.f32 %v138, %v143
  %147 = vrot.lane.b32.xlu0 %v145, 16
  %v148 = vpop.permute.xlu0 %147
  %v150 = vadd.f32 %v140, %v148
  %v151 = vtanh.pop %v150
  %153 = vrot.lane.b32.xlu0 %v151, 32
  %v154 = vpop.permute.xlu0 %153
  %v156 = vmul.f32 %v138, %v154
  %158 = vrot.lane.b32.xlu0 %v156, 80
  %v159 = vpop.permute.xlu0 %158
  %s161 = scalar_lea.vmem %s2, 2
  %162 = vst.msk [vmem:[%s161] sm:$0x3] %vm93, %v159
  %s163 = scalar_lea.vmem %s0, 4
  %v164 = vld [vmem:[%s163] sm:$0x3]
  %v165 = vsel %vm23, %v159, 0
  %167 = vmatpush.msra.mxu0 0.0
  %168 = vmatpush.msra.mxu0 0.0
  %169 = vmatpush.msra.mxu0 0.0
  %170 = vmatpush.msra.mxu0 0.0
  %171 = vmatpush.msra.mxu0 0.0
  %172 = vmatpush.msra.mxu0 0.0
  %173 = vmatpush.msra.mxu0 0.0
  %174 = vmatpush.msra.mxu0 0.0
  %175 = vmatpush.msra.mxu0 0.0
  %176 = vmatpush.msra.mxu0 0.0
  %177 = vmatpush.msra.mxu0 0.0
  %178 = vmatpush.msra.mxu0 0.0
  %179 = vmatpush.msra.mxu0 0.0
  %180 = vmatpush.msra.mxu0 0.0
  %181 = vmatpush.msra.mxu0 %v19
  %182 = vmatpush.msra.mxu0 %v18
  %183 = vmatmul.f32.gmra.mxu0 %v165
  %v184 = vpop.f32.mrf.mxu0
  %v185 = vadd.f32 0.0, %v184
  %186 = vdwg.mxu0
  %v187 = vadd.f32 %v164, %v185
  %v188 = vxor.u32 %v187, 2147483648
  %v189 = vmul.f32 %v188, 1.442695
  %v190 = vpow.pop %v189
  %v191 = vadd.f32 %v190, 1.0
  %v192 = vrcp.pop %v191
  %v193 = vmul.f32 %v191, %v192
  %v194 = vsub.f32 1.0, %v193
  %v195 = vmul.f32 %v192, %v194
  %v196 = vadd.f32 %v192, %v195
  %vm197 = vweird.f32 %v191
  %vm198 = vweird.f32 %v192
  %vm199 = vmor %vm197, %vm198
  %v200 = vsel %vm199, %v192, %v196
  %v201 = vand.u32 2147483647, %v191
  %vm202 = vcmp.eq.f32.partialorder %v201, 8.507059e+37
  %v203 = vand.u32 %v191, 2147483648
  %v204 = vor.u32 1.1754944e-38, %v203
  %v205 = vsel %vm202, %v204, %v200
  %v206 = vmul.f32 1.0, %v205
  %v207 = vtanh.pop %v187
  %v208 = vmul.f32 %v206, %v150
  %210 = vrot.lane.b32.xlu0 %v207, 96
  %v211 = vpop.permute.xlu0 %210
  %v213 = vmul.f32 %v206, %v211
  %215 = vrot.lane.b32.xlu0 %v213, 16
  %v216 = vpop.permute.xlu0 %215
  %v218 = vadd.f32 %v208, %v216
  %v219 = vtanh.pop %v218
  %221 = vrot.lane.b32.xlu0 %v219, 32
  %v222 = vpop.permute.xlu0 %221
  %v224 = vmul.f32 %v206, %v222
  %226 = vrot.lane.b32.xlu0 %v224, 80
  %v227 = vpop.permute.xlu0 %226
  %s229 = scalar_lea.vmem %s2, 4
  %230 = vst.msk [vmem:[%s229] sm:$0x3] %vm93, %v227
  %s231 = scalar_lea.vmem %s0, 6
  %v232 = vld [vmem:[%s231] sm:$0x3]
  %v233 = vsel %vm23, %v227, 0
  %235 = vmatpush.msra.mxu0 0.0
  %236 = vmatpush.msra.mxu0 0.0
  %237 = vmatpush.msra.mxu0 0.0
  %238 = vmatpush.msra.mxu0 0.0
  %239 = vmatpush.msra.mxu0 0.0
  %240 = vmatpush.msra.mxu0 0.0
  %241 = vmatpush.msra.mxu0 0.0
  %242 = vmatpush.msra.mxu0 0.0
  %243 = vmatpush.msra.mxu0 0.0
  %244 = vmatpush.msra.mxu0 0.0
  %245 = vmatpush.msra.mxu0 0.0
  %246 = vmatpush.msra.mxu0 0.0
  %247 = vmatpush.msra.mxu0 0.0
  %248 = vmatpush.msra.mxu0 0.0
  %249 = vmatpush.msra.mxu0 %v19
  %250 = vmatpush.msra.mxu0 %v18
  %251 = vmatmul.f32.gmra.mxu0 %v233
  %v252 = vpop.f32.mrf.mxu0
  %v253 = vadd.f32 0.0, %v252
  %254 = vdwg.mxu0
  %v255 = vadd.f32 %v232, %v253
  %v256 = vxor.u32 %v255, 2147483648
  %v257 = vmul.f32 %v256, 1.442695
  %v258 = vpow.pop %v257
  %v259 = vadd.f32 %v258, 1.0
  %v260 = vrcp.pop %v259
  %v261 = vmul.f32 %v259, %v260
  %v262 = vsub.f32 1.0, %v261
  %v263 = vmul.f32 %v260, %v262
  %v264 = vadd.f32 %v260, %v263
  %vm265 = vweird.f32 %v259
  %vm266 = vweird.f32 %v260
  %vm267 = vmor %vm265, %vm266
  %v268 = vsel %vm267, %v260, %v264
  %v269 = vand.u32 2147483647, %v259
  %vm270 = vcmp.eq.f32.partialorder %v269, 8.507059e+37
  %v271 = vand.u32 %v259, 2147483648
  %v272 = vor.u32 1.1754944e-38, %v271
  %v273 = vsel %vm270, %v272, %v268
  %v274 = vmul.f32 1.0, %v273
  %v275 = vtanh.pop %v255
  %v276 = vmul.f32 %v274, %v218
  %278 = vrot.lane.b32.xlu0 %v275, 96
  %v279 = vpop.permute.xlu0 %278
  %v281 = vmul.f32 %v274, %v279
  %283 = vrot.lane.b32.xlu0 %v281, 16
  %v284 = vpop.permute.xlu0 %283
  %v286 = vadd.f32 %v276, %v284
  %v287 = vtanh.pop %v286
  %289 = vrot.lane.b32.xlu0 %v287, 32
  %v290 = vpop.permute.xlu0 %289
  %v292 = vmul.f32 %v274, %v290
  %294 = vrot.lane.b32.xlu0 %v292, 80
  %v295 = vpop.permute.xlu0 %294
  %s297 = scalar_lea.vmem %s2, 6
  %298 = vst.msk [vmem:[%s297] sm:$0x3] %vm93, %v295
  %299 = vst.msk [vmem:[#allocation2] sm:$0x3] %vm93, %v295
  %301 = vrot.lane.b32.xlu0 %v286, 112
  %v302 = vpop.permute.xlu0 %301
  %304 = vst.msk [vmem:[#allocation3] sm:$0x3] %vm93, %v302
  // Predicated region
  $region14: #{multiscale_lstm_forward.12} parent=0 // pred_check
    _
  $region15: #{multiscale_lstm_forward.12} parent=0 // pred_check_branch
    %306 = sbr.rel (0) target = $region17
  $region16: #{multiscale_lstm_forward.12} parent=0 // pred_region
    _
  $region17: #{multiscale_lstm_forward.12} parent=0 // pred_fallthru
    _
  // Predicated region
  $region18: #{multiscale_lstm_forward.12} parent=0 // pred_check
    _
  $region19: #{multiscale_lstm_forward.12} parent=0 // pred_check_branch
    %308 = sbr.rel (0) target = $region21
  $region20: #{multiscale_lstm_forward.12} parent=0 // pred_region
    _
  $region21: #{multiscale_lstm_forward.12} parent=0 // pred_fallthru
    _

// kernel: multiscale_lstm_forward.8
$region0: #{multiscale_lstm_forward.8}
  #allocation0 [shape = 'u32[]', space=smem, size = 0x4, offset = 0x4, fixed_abs, tag = 'smem constant byte address 0x4 - core index']
  #allocation1 [shape = 'u32[72,128]{1,0:T(1,128)}', space=vmem, size = 0x9000, scoped, tag = 'internal scratch']
  #allocation2 [shape = 'f32[2,32]{1,0:T(2,128)}', space=vmem, size = 0x400, scoped, tag = 'scratch operand']
  #allocation3 [shape = 'f32[2,32]{1,0:T(2,128)}', space=vmem, size = 0x400, scoped, tag = 'scratch operand']
  %s0 = inlined_call_operand.vmem [shape: f32[8,2,128], index: 0, kind: input, shape index: {}]
  %s1 = inlined_call_operand.vmem [shape: f32[32,128], index: 1, kind: input, shape index: {}]
  %s2 = inlined_call_operand.vmem [shape: f32[8,2,32], index: 2, kind: output, shape index: {}]
  %s3 = sld [smem:[#allocation0]]
  $region22: #{multiscale_lstm_forward.8} parent=0
    _
  %s5 = ssub.s32 1, %s3
  %s6 = scalar_select 0, %s5, %s3
  // Predicated region
  $region2: #{multiscale_lstm_forward.8} parent=0 // pred_check
    _
  $region3: #{multiscale_lstm_forward.8} parent=0 // pred_check_branch
    %8 = sbr.rel (0) target = $region5
  $region4: #{multiscale_lstm_forward.8} parent=0 // pred_region
    _
  $region5: #{multiscale_lstm_forward.8} parent=0 // pred_fallthru
    _
  // Predicated region
  $region6: #{multiscale_lstm_forward.8} parent=0 // pred_check
    _
  $region7: #{multiscale_lstm_forward.8} parent=0 // pred_check_branch
    %10 = sbr.rel (0) target = $region9
  $region8: #{multiscale_lstm_forward.8} parent=0 // pred_region
    _
  $region9: #{multiscale_lstm_forward.8} parent=0 // pred_fallthru
    _
  %p11 = scmp.eq.s32.totalorder 0, 0
  // Predicated region
  $region10: #{multiscale_lstm_forward.8} parent=0 // pred_check
    %p12 = pneg %p11
  $region11: #{multiscale_lstm_forward.8} parent=0 // pred_check_branch
    %14 = sbr.rel (%p12) target = $region13
  $region12: #{multiscale_lstm_forward.8} parent=0 // pred_region
    %vm15 = vcmask 254976
    %16 = vst.msk [vmem:[#allocation2] sm:$0x3] %vm15, 0.0
    %17 = vst.msk [vmem:[#allocation3] sm:$0x3] %vm15, 0.0
  $region13: #{multiscale_lstm_forward.8} parent=0 // pred_fallthru
    _
  %v18 = vld [vmem:[%s1] sm:$0xff]
  %v19 = vld [vmem:[%s1 + $0x8] sm:$0xff]
  %v20 = vld [vmem:[%s1 + $0x10] sm:$0xff]
  %v21 = vld [vmem:[%s1 + $0x18] sm:$0xff]
  %v22 = vld [vmem:[#allocation2] sm:$0x3]
  %v23 = vld [vmem:[#allocation3] sm:$0x3]
  %v24 = vld [vmem:[%s0] sm:$0x3]
  %vm25 = vcmask 261120
  %v27 = vsel %vm25, %v22, 0
  %29 = vmatpush.msra.mxu0 0.0
  %30 = vmatpush.msra.mxu0 0.0
  %31 = vmatpush.msra.mxu0 0.0
  %32 = vmatpush.msra.mxu0 0.0
  %33 = vmatpush.msra.mxu0 0.0
  %34 = vmatpush.msra.mxu0 0.0
  %35 = vmatpush.msra.mxu0 0.0
  %36 = vmatpush.msra.mxu0 0.0
  %37 = vmatpush.msra.mxu0 0.0
  %38 = vmatpush.msra.mxu0 0.0
  %39 = vmatpush.msra.mxu0 0.0
  %40 = vmatpush.msra.mxu0 0.0
  %41 = vmatpush.msra.mxu0 %v21
  %42 = vmatpush.msra.mxu0 %v20
  %43 = vmatpush.msra.mxu0 %v19
  %44 = vmatpush.msra.mxu0 %v18
  %45 = vmatmul.f32.gmra.mxu0 %v27
  %v46 = vpop.f32.mrf.mxu0
  %v47 = vadd.f32 0.0, %v46
  %48 = vdwg.mxu0
  %v49 = vadd.f32 %v24, %v47
  %v50 = vxor.u32 %v49, 2147483648
  %v51 = vmul.f32 %v50, 1.442695
  %v52 = vpow.pop %v51
  %v53 = vadd.f32 %v52, 1.0
  %v54 = vrcp.pop %v53
  %v55 = vmul.f32 %v53, %v54
  %v56 = vsub.f32 1.0, %v55
  %v57 = vmul.f32 %v54, %v56
  %v58 = vadd.f32 %v54, %v57
  %vm59 = vweird.f32 %v53
  %vm60 = vweird.f32 %v54
  %vm61 = vmor %vm59, %vm60
  %v62 = vsel %vm61, %v54, %v58
  %v63 = vand.u32 2147483647, %v53
  %vm64 = vcmp.eq.f32.partialorder %v63, 8.507059e+37
  %v65 = vand.u32 %v53, 2147483648
  %v66 = vor.u32 1.1754944e-38, %v65
  %v67 = vsel %vm64, %v66, %v62
  %v68 = vmul.f32 1.0, %v67
  %v69 = vtanh.pop %v49
  %71 = vrot.lane.b32.xlu0 %v23, 32
  %v72 = vpop.permute.xlu0 %71
  %v74 = vmul.f32 %v68, %v72
  %76 = vrot.lane.b32.xlu0 %v69, 64
  %v77 = vpop.permute.xlu0 %76
  %v79 = vmul.f32 %v68, %v77
  %81 = vrot.lane.b32.xlu0 %v79, 32
  %v82 = vpop.permute.xlu0 %81
  %v84 = vadd.f32 %v74, %v82
  %v85 = vtanh.pop %v84
  %87 = vrot.lane.b32.xlu0 %v85, 64
  %v88 = vpop.permute.xlu0 %87
  %v90 = vmul.f32 %v68, %v88
  %92 = vrot.lane.b32.xlu0 %v90, 32
  %v93 = vpop.permute.xlu0 %92
  %vm95 = vcmask 254976
  %96 = vst.msk [vmem:[%s2] sm:$0x3] %vm95, %v93
  %s97 = scalar_lea.vmem %s0, 2
  %v98 = vld [vmem:[%s97] sm:$0x3]
  %v99 = vsel %vm25, %v93, 0
  %101 = vmatpush.msra.mxu0 0.0
  %102 = vmatpush.msra.mxu0 0.0
  %103 = vmatpush.msra.mxu0 0.0
  %104 = vmatpush.msra.mxu0 0.0
  %105 = vmatpush.msra.mxu0 0.0
  %106 = vmatpush.msra.mxu0 0.0
  %107 = vmatpush.msra.mxu0 0.0
  %108 = vmatpush.msra.mxu0 0.0
  %109 = vmatpush.msra.mxu0 0.0
  %110 = vmatpush.msra.mxu0 0.0
  %111 = vmatpush.msra.mxu0 0.0
  %112 = vmatpush.msra.mxu0 0.0
  %113 = vmatpush.msra.mxu0 %v21
  %114 = vmatpush.msra.mxu0 %v20
  %115 = vmatpush.msra.mxu0 %v19
  %116 = vmatpush.msra.mxu0 %v18
  %117 = vmatmul.f32.gmra.mxu0 %v99
  %v118 = vpop.f32.mrf.mxu0
  %v119 = vadd.f32 0.0, %v118
  %120 = vdwg.mxu0
  %v121 = vadd.f32 %v98, %v119
  %v122 = vxor.u32 %v121, 2147483648
  %v123 = vmul.f32 %v122, 1.442695
  %v124 = vpow.pop %v123
  %v125 = vadd.f32 %v124, 1.0
  %v126 = vrcp.pop %v125
  %v127 = vmul.f32 %v125, %v126
  %v128 = vsub.f32 1.0, %v127
  %v129 = vmul.f32 %v126, %v128
  %v130 = vadd.f32 %v126, %v129
  %vm131 = vweird.f32 %v125
  %vm132 = vweird.f32 %v126
  %vm133 = vmor %vm131, %vm132
  %v134 = vsel %vm133, %v126, %v130
  %v135 = vand.u32 2147483647, %v125
  %vm136 = vcmp.eq.f32.partialorder %v135, 8.507059e+37
  %v137 = vand.u32 %v125, 2147483648
  %v138 = vor.u32 1.1754944e-38, %v137
  %v139 = vsel %vm136, %v138, %v134
  %v140 = vmul.f32 1.0, %v139
  %v141 = vtanh.pop %v121
  %v142 = vmul.f32 %v140, %v84
  %144 = vrot.lane.b32.xlu0 %v141, 64
  %v145 = vpop.permute.xlu0 %144
  %v147 = vmul.f32 %v140, %v145
  %149 = vrot.lane.b32.xlu0 %v147, 32
  %v150 = vpop.permute.xlu0 %149
  %v152 = vadd.f32 %v142, %v150
  %v153 = vtanh.pop %v152
  %155 = vrot.lane.b32.xlu0 %v153, 64
  %v156 = vpop.permute.xlu0 %155
  %v158 = vmul.f32 %v140, %v156
  %160 = vrot.lane.b32.xlu0 %v158, 32
  %v161 = vpop.permute.xlu0 %160
  %s163 = scalar_lea.vmem %s2, 2
  %164 = vst.msk [vmem:[%s163] sm:$0x3] %vm95, %v161
  %s165 = scalar_lea.vmem %s0, 4
  %v166 = vld [vmem:[%s165] sm:$0x3]
  %v167 = vsel %vm25, %v161, 0
  %169 = vmatpush.msra.mxu0 0.0
  %170 = vmatpush.msra.mxu0 0.0
  %171 = vmatpush.msra.mxu0 0.0
  %172 = vmatpush.msra.mxu0 0.0
  %173 = vmatpush.msra.mxu0 0.0
  %174 = vmatpush.msra.mxu0 0.0
  %175 = vmatpush.msra.mxu0 0.0
  %176 = vmatpush.msra.mxu0 0.0
  %177 = vmatpush.msra.mxu0 0.0
  %178 = vmatpush.msra.mxu0 0.0
  %179 = vmatpush.msra.mxu0 0.0
  %180 = vmatpush.msra.mxu0 0.0
  %181 = vmatpush.msra.mxu0 %v21
  %182 = vmatpush.msra.mxu0 %v20
  %183 = vmatpush.msra.mxu0 %v19
  %184 = vmatpush.msra.mxu0 %v18
  %185 = vmatmul.f32.gmra.mxu0 %v167
  %v186 = vpop.f32.mrf.mxu0
  %v187 = vadd.f32 0.0, %v186
  %188 = vdwg.mxu0
  %v189 = vadd.f32 %v166, %v187
  %v190 = vxor.u32 %v189, 2147483648
  %v191 = vmul.f32 %v190, 1.442695
  %v192 = vpow.pop %v191
  %v193 = vadd.f32 %v192, 1.0
  %v194 = vrcp.pop %v193
  %v195 = vmul.f32 %v193, %v194
  %v196 = vsub.f32 1.0, %v195
  %v197 = vmul.f32 %v194, %v196
  %v198 = vadd.f32 %v194, %v197
  %vm199 = vweird.f32 %v193
  %vm200 = vweird.f32 %v194
  %vm201 = vmor %vm199, %vm200
  %v202 = vsel %vm201, %v194, %v198
  %v203 = vand.u32 2147483647, %v193
  %vm204 = vcmp.eq.f32.partialorder %v203, 8.507059e+37
  %v205 = vand.u32 %v193, 2147483648
  %v206 = vor.u32 1.1754944e-38, %v205
  %v207 = vsel %vm204, %v206, %v202
  %v208 = vmul.f32 1.0, %v207
  %v209 = vtanh.pop %v189
  %v210 = vmul.f32 %v208, %v152
  %212 = vrot.lane.b32.xlu0 %v209, 64
  %v213 = vpop.permute.xlu0 %212
  %v215 = vmul.f32 %v208, %v213
  %217 = vrot.lane.b32.xlu0 %v215, 32
  %v218 = vpop.permute.xlu0 %217
  %v220 = vadd.f32 %v210, %v218
  %v221 = vtanh.pop %v220
  %223 = vrot.lane.b32.xlu0 %v221, 64
  %v224 = vpop.permute.xlu0 %223
  %v226 = vmul.f32 %v208, %v224
  %228 = vrot.lane.b32.xlu0 %v226, 32
  %v229 = vpop.permute.xlu0 %228
  %s231 = scalar_lea.vmem %s2, 4
  %232 = vst.msk [vmem:[%s231] sm:$0x3] %vm95, %v229
  %s233 = scalar_lea.vmem %s0, 6
  %v234 = vld [vmem:[%s233] sm:$0x3]
  %v235 = vsel %vm25, %v229, 0
  %237 = vmatpush.msra.mxu0 0.0
  %238 = vmatpush.msra.mxu0 0.0
  %239 = vmatpush.msra.mxu0 0.0
  %240 = vmatpush.msra.mxu0 0.0
  %241 = vmatpush.msra.mxu0 0.0
  %242 = vmatpush.msra.mxu0 0.0
  %243 = vmatpush.msra.mxu0 0.0
  %244 = vmatpush.msra.mxu0 0.0
  %245 = vmatpush.msra.mxu0 0.0
  %246 = vmatpush.msra.mxu0 0.0
  %247 = vmatpush.msra.mxu0 0.0
  %248 = vmatpush.msra.mxu0 0.0
  %249 = vmatpush.msra.mxu0 %v21
  %250 = vmatpush.msra.mxu0 %v20
  %251 = vmatpush.msra.mxu0 %v19
  %252 = vmatpush.msra.mxu0 %v18
  %253 = vmatmul.f32.gmra.mxu0 %v235
  %v254 = vpop.f32.mrf.mxu0
  %v255 = vadd.f32 0.0, %v254
  %256 = vdwg.mxu0
  %v257 = vadd.f32 %v234, %v255
  %v258 = vxor.u32 %v257, 2147483648
  %v259 = vmul.f32 %v258, 1.442695
  %v260 = vpow.pop %v259
  %v261 = vadd.f32 %v260, 1.0
  %v262 = vrcp.pop %v261
  %v263 = vmul.f32 %v261, %v262
  %v264 = vsub.f32 1.0, %v263
  %v265 = vmul.f32 %v262, %v264
  %v266 = vadd.f32 %v262, %v265
  %vm267 = vweird.f32 %v261
  %vm268 = vweird.f32 %v262
  %vm269 = vmor %vm267, %vm268
  %v270 = vsel %vm269, %v262, %v266
  %v271 = vand.u32 2147483647, %v261
  %vm272 = vcmp.eq.f32.partialorder %v271, 8.507059e+37
  %v273 = vand.u32 %v261, 2147483648
  %v274 = vor.u32 1.1754944e-38, %v273
  %v275 = vsel %vm272, %v274, %v270
  %v276 = vmul.f32 1.0, %v275
  %v277 = vtanh.pop %v257
  %v278 = vmul.f32 %v276, %v220
  %280 = vrot.lane.b32.xlu0 %v277, 64
  %v281 = vpop.permute.xlu0 %280
  %v283 = vmul.f32 %v276, %v281
  %285 = vrot.lane.b32.xlu0 %v283, 32
  %v286 = vpop.permute.xlu0 %285
  %v288 = vadd.f32 %v278, %v286
  %v289 = vtanh.pop %v288
  %291 = vrot.lane.b32.xlu0 %v289, 64
  %v292 = vpop.permute.xlu0 %291
  %v294 = vmul.f32 %v276, %v292
  %296 = vrot.lane.b32.xlu0 %v294, 32
  %v297 = vpop.permute.xlu0 %296
  %s299 = scalar_lea.vmem %s2, 6
  %300 = vst.msk [vmem:[%s299] sm:$0x3] %vm95, %v297
  %s301 = scalar_lea.vmem %s0, 8
  %v302 = vld [vmem:[%s301] sm:$0x3]
  %v303 = vsel %vm25, %v297, 0
  %305 = vmatpush.msra.mxu0 0.0
  %306 = vmatpush.msra.mxu0 0.0
  %307 = vmatpush.msra.mxu0 0.0
  %308 = vmatpush.msra.mxu0 0.0
  %309 = vmatpush.msra.mxu0 0.0
  %310 = vmatpush.msra.mxu0 0.0
  %311 = vmatpush.msra.mxu0 0.0
  %312 = vmatpush.msra.mxu0 0.0
  %313 = vmatpush.msra.mxu0 0.0
  %314 = vmatpush.msra.mxu0 0.0
  %315 = vmatpush.msra.mxu0 0.0
  %316 = vmatpush.msra.mxu0 0.0
  %317 = vmatpush.msra.mxu0 %v21
  %318 = vmatpush.msra.mxu0 %v20
  %319 = vmatpush.msra.mxu0 %v19
  %320 = vmatpush.msra.mxu0 %v18
  %321 = vmatmul.f32.gmra.mxu0 %v303
  %v322 = vpop.f32.mrf.mxu0
  %v323 = vadd.f32 0.0, %v322
  %324 = vdwg.mxu0
  %v325 = vadd.f32 %v302, %v323
  %v326 = vxor.u32 %v325, 2147483648
  %v327 = vmul.f32 %v326, 1.442695
  %v328 = vpow.pop %v327
  %v329 = vadd.f32 %v328, 1.0
  %v330 = vrcp.pop %v329
  %v331 = vmul.f32 %v329, %v330
  %v332 = vsub.f32 1.0, %v331
  %v333 = vmul.f32 %v330, %v332
  %v334 = vadd.f32 %v330, %v333
  %vm335 = vweird.f32 %v329
  %vm336 = vweird.f32 %v330
  %vm337 = vmor %vm335, %vm336
  %v338 = vsel %vm337, %v330, %v334
  %v339 = vand.u32 2147483647, %v329
  %vm340 = vcmp.eq.f32.partialorder %v339, 8.507059e+37
  %v341 = vand.u32 %v329, 2147483648
  %v342 = vor.u32 1.1754944e-38, %v341
  %v343 = vsel %vm340, %v342, %v338
  %v344 = vmul.f32 1.0, %v343
  %v345 = vtanh.pop %v325
  %v346 = vmul.f32 %v344, %v288
  %348 = vrot.lane.b32.xlu0 %v345, 64
  %v349 = vpop.permute.xlu0 %348
  %v351 = vmul.f32 %v344, %v349
  %353 = vrot.lane.b32.xlu0 %v351, 32
  %v354 = vpop.permute.xlu0 %353
  %v356 = vadd.f32 %v346, %v354
  %v357 = vtanh.pop %v356
  %359 = vrot.lane.b32.xlu0 %v357, 64
  %v360 = vpop.permute.xlu0 %359
  %v362 = vmul.f32 %v344, %v360
  %364 = vrot.lane.b32.xlu0 %v362, 32
  %v365 = vpop.permute.xlu0 %364
  %s367 = scalar_lea.vmem %s2, 8
  %368 = vst.msk [vmem:[%s367] sm:$0x3] %vm95, %v365
  %s369 = scalar_lea.vmem %s0, 10
  %v370 = vld [vmem:[%s369] sm:$0x3]
  %v371 = vsel %vm25, %v365, 0
  %373 = vmatpush.msra.mxu0 0.0
  %374 = vmatpush.msra.mxu0 0.0
  %375 = vmatpush.msra.mxu0 0.0
  %376 = vmatpush.msra.mxu0 0.0
  %377 = vmatpush.msra.mxu0 0.0
  %378 = vmatpush.msra.mxu0 0.0
  %379 = vmatpush.msra.mxu0 0.0
  %380 = vmatpush.msra.mxu0 0.0
  %381 = vmatpush.msra.mxu0 0.0
  %382 = vmatpush.msra.mxu0 0.0
  %383 = vmatpush.msra.mxu0 0.0
  %384 = vmatpush.msra.mxu0 0.0
  %385 = vmatpush.msra.mxu0 %v21
  %386 = vmatpush.msra.mxu0 %v20
  %387 = vmatpush.msra.mxu0 %v19
  %388 = vmatpush.msra.mxu0 %v18
  %389 = vmatmul.f32.gmra.mxu0 %v371
  %v390 = vpop.f32.mrf.mxu0
  %v391 = vadd.f32 0.0, %v390
  %392 = vdwg.mxu0
  %v393 = vadd.f32 %v370, %v391
  %v394 = vxor.u32 %v393, 2147483648
  %v395 = vmul.f32 %v394, 1.442695
  %v396 = vpow.pop %v395
  %v397 = vadd.f32 %v396, 1.0
  %v398 = vrcp.pop %v397
  %v399 = vmul.f32 %v397, %v398
  %v400 = vsub.f32 1.0, %v399
  %v401 = vmul.f32 %v398, %v400
  %v402 = vadd.f32 %v398, %v401
  %vm403 = vweird.f32 %v397
  %vm404 = vweird.f32 %v398
  %vm405 = vmor %vm403, %vm404
  %v406 = vsel %vm405, %v398, %v402
  %v407 = vand.u32 2147483647, %v397
  %vm408 = vcmp.eq.f32.partialorder %v407, 8.507059e+37
  %v409 = vand.u32 %v397, 2147483648
  %v410 = vor.u32 1.1754944e-38, %v409
  %v411 = vsel %vm408, %v410, %v406
  %v412 = vmul.f32 1.0, %v411
  %v413 = vtanh.pop %v393
  %v414 = vmul.f32 %v412, %v356
  %416 = vrot.lane.b32.xlu0 %v413, 64
  %v417 = vpop.permute.xlu0 %416
  %v419 = vmul.f32 %v412, %v417
  %421 = vrot.lane.b32.xlu0 %v419, 32
  %v422 = vpop.permute.xlu0 %421
  %v424 = vadd.f32 %v414, %v422
  %v425 = vtanh.pop %v424
  %427 = vrot.lane.b32.xlu0 %v425, 64
  %v428 = vpop.permute.xlu0 %427
  %v430 = vmul.f32 %v412, %v428
  %432 = vrot.lane.b32.xlu0 %v430, 32
  %v433 = vpop.permute.xlu0 %432
  %s435 = scalar_lea.vmem %s2, 10
  %436 = vst.msk [vmem:[%s435] sm:$0x3] %vm95, %v433
  %s437 = scalar_lea.vmem %s0, 12
  %v438 = vld [vmem:[%s437] sm:$0x3]
  %v439 = vsel %vm25, %v433, 0
  %441 = vmatpush.msra.mxu0 0.0
  %442 = vmatpush.msra.mxu0 0.0
  %443 = vmatpush.msra.mxu0 0.0
  %444 = vmatpush.msra.mxu0 0.0
  %445 = vmatpush.msra.mxu0 0.0
  %446 = vmatpush.msra.mxu0 0.0
  %447 = vmatpush.msra.mxu0 0.0
  %448 = vmatpush.msra.mxu0 0.0
  %449 = vmatpush.msra.mxu0 0.0
  %450 = vmatpush.msra.mxu0 0.0
  %451 = vmatpush.msra.mxu0 0.0
  %452 = vmatpush.msra.mxu0 0.0
  %453 = vmatpush.msra.mxu0 %v21
  %454 = vmatpush.msra.mxu0 %v20
  %455 = vmatpush.msra.mxu0 %v19
  %456 = vmatpush.msra.mxu0 %v18
  %457 = vmatmul.f32.gmra.mxu0 %v439
  %v458 = vpop.f32.mrf.mxu0
  %v459 = vadd.f32 0.0, %v458
  %460 = vdwg.mxu0
  %v461 = vadd.f32 %v438, %v459
  %v462 = vxor.u32 %v461, 2147483648
  %v463 = vmul.f32 %v462, 1.442695
  %v464 = vpow.pop %v463
  %v465 = vadd.f32 %v464, 1.0
  %v466 = vrcp.pop %v465
  %v467 = vmul.f32 %v465, %v466
  %v468 = vsub.f32 1.0, %v467
  %v469 = vmul.f32 %v466, %v468
  %v470 = vadd.f32 %v466, %v469
  %vm471 = vweird.f32 %v465
  %vm472 = vweird.f32 %v466
  %vm473 = vmor %vm471, %vm472
  %v474 = vsel %vm473, %v466, %v470
  %v475 = vand.u32 2147483647, %v465
  %vm476 = vcmp.eq.f32.partialorder %v475, 8.507059e+37
  %v477 = vand.u32 %v465, 2147483648
  %v478 = vor.u32 1.1754944e-38, %v477
  %v479 = vsel %vm476, %v478, %v474
  %v480 = vmul.f32 1.0, %v479
  %v481 = vtanh.pop %v461
  %v482 = vmul.f32 %v480, %v424
  %484 = vrot.lane.b32.xlu0 %v481, 64
  %v485 = vpop.permute.xlu0 %484
  %v487 = vmul.f32 %v480, %v485
  %489 = vrot.lane.b32.xlu0 %v487, 32
  %v490 = vpop.permute.xlu0 %489
  %v492 = vadd.f32 %v482, %v490
  %v493 = vtanh.pop %v492
  %495 = vrot.lane.b32.xlu0 %v493, 64
  %v496 = vpop.permute.xlu0 %495
  %v498 = vmul.f32 %v480, %v496
  %500 = vrot.lane.b32.xlu0 %v498, 32
  %v501 = vpop.permute.xlu0 %500
  %s503 = scalar_lea.vmem %s2, 12
  %504 = vst.msk [vmem:[%s503] sm:$0x3] %vm95, %v501
  %s505 = scalar_lea.vmem %s0, 14
  %v506 = vld [vmem:[%s505] sm:$0x3]
  %v507 = vsel %vm25, %v501, 0
  %509 = vmatpush.msra.mxu0 0.0
  %510 = vmatpush.msra.mxu0 0.0
  %511 = vmatpush.msra.mxu0 0.0
  %512 = vmatpush.msra.mxu0 0.0
  %513 = vmatpush.msra.mxu0 0.0
  %514 = vmatpush.msra.mxu0 0.0
  %515 = vmatpush.msra.mxu0 0.0
  %516 = vmatpush.msra.mxu0 0.0
  %517 = vmatpush.msra.mxu0 0.0
  %518 = vmatpush.msra.mxu0 0.0
  %519 = vmatpush.msra.mxu0 0.0
  %520 = vmatpush.msra.mxu0 0.0
  %521 = vmatpush.msra.mxu0 %v21
  %522 = vmatpush.msra.mxu0 %v20
  %523 = vmatpush.msra.mxu0 %v19
  %524 = vmatpush.msra.mxu0 %v18
  %525 = vmatmul.f32.gmra.mxu0 %v507
  %v526 = vpop.f32.mrf.mxu0
  %v527 = vadd.f32 0.0, %v526
  %528 = vdwg.mxu0
  %v529 = vadd.f32 %v506, %v527
  %v530 = vxor.u32 %v529, 2147483648
  %v531 = vmul.f32 %v530, 1.442695
  %v532 = vpow.pop %v531
  %v533 = vadd.f32 %v532, 1.0
  %v534 = vrcp.pop %v533
  %v535 = vmul.f32 %v533, %v534
  %v536 = vsub.f32 1.0, %v535
  %v537 = vmul.f32 %v534, %v536
  %v538 = vadd.f32 %v534, %v537
  %vm539 = vweird.f32 %v533
  %vm540 = vweird.f32 %v534
  %vm541 = vmor %vm539, %vm540
  %v542 = vsel %vm541, %v534, %v538
  %v543 = vand.u32 2147483647, %v533
  %vm544 = vcmp.eq.f32.partialorder %v543, 8.507059e+37
  %v545 = vand.u32 %v533, 2147483648
  %v546 = vor.u32 1.1754944e-38, %v545
  %v547 = vsel %vm544, %v546, %v542
  %v548 = vmul.f32 1.0, %v547
  %v549 = vtanh.pop %v529
  %v550 = vmul.f32 %v548, %v492
  %552 = vrot.lane.b32.xlu0 %v549, 64
  %v553 = vpop.permute.xlu0 %552
  %v555 = vmul.f32 %v548, %v553
  %557 = vrot.lane.b32.xlu0 %v555, 32
  %v558 = vpop.permute.xlu0 %557
  %v560 = vadd.f32 %v550, %v558
  %v561 = vtanh.pop %v560
  %563 = vrot.lane.b32.xlu0 %v561, 64
  %v564 = vpop.permute.xlu0 %563
  %v566 = vmul.f32 %v548, %v564
  %568 = vrot.lane.b32.xlu0 %v566, 32
  %v569 = vpop.permute.xlu0 %568
  %s571 = scalar_lea.vmem %s2, 14
  %572 = vst.msk [vmem:[%s571] sm:$0x3] %vm95, %v569
  %573 = vst.msk [vmem:[#allocation2] sm:$0x3] %vm95, %v569
  %575 = vrot.lane.b32.xlu0 %v560, 96
  %v576 = vpop.permute.xlu0 %575
  %578 = vst.msk [vmem:[#allocation3] sm:$0x3] %vm95, %v576
  // Predicated region
  $region14: #{multiscale_lstm_forward.8} parent=0 // pred_check
    _
  $region15: #{multiscale_lstm_forward.8} parent=0 // pred_check_branch
    %580 = sbr.rel (0) target = $region17
  $region16: #{multiscale_lstm_forward.8} parent=0 // pred_region
    _
  $region17: #{multiscale_lstm_forward.8} parent=0 // pred_fallthru
    _
  // Predicated region
  $region18: #{multiscale_lstm_forward.8} parent=0 // pred_check
    _
  $region19: #{multiscale_lstm_forward.8} parent=0 // pred_check_branch
    %582 = sbr.rel (0) target = $region21
  $region20: #{multiscale_lstm_forward.8} parent=0 // pred_region
    _
  $region21: #{multiscale_lstm_forward.8} parent=0 // pred_fallthru
    _

// kernel: multiscale_lstm_forward.9
$region0: #{multiscale_lstm_forward.9}
  #allocation0 [shape = 'u32[]', space=smem, size = 0x4, offset = 0x4, fixed_abs, tag = 'smem constant byte address 0x4 - core index']
  #allocation1 [shape = 'u32[72,128]{1,0:T(1,128)}', space=vmem, size = 0x9000, scoped, tag = 'internal scratch']
  %s0 = inlined_call_operand.vmem [shape: f32[16,32], index: 0, kind: input, shape index: {}]
  %s1 = inlined_call_operand.vmem [shape: f32[32,128], index: 1, kind: input, shape index: {}]
  %s2 = inlined_call_operand.vmem [shape: f32[1,128], index: 2, kind: input, shape index: {}]
  %s3 = inlined_call_operand.vmem [shape: f32[16,128], index: 3, kind: output, shape index: {}]
  %s4 = sld [smem:[#allocation0]]
  $region22: #{multiscale_lstm_forward.9} parent=0
    _
  %s6 = ssub.s32 1, %s4
  %s7 = scalar_select 0, %s6, %s4
  // Predicated region
  $region2: #{multiscale_lstm_forward.9} parent=0 // pred_check
    _
  $region3: #{multiscale_lstm_forward.9} parent=0 // pred_check_branch
    %9 = sbr.rel (0) target = $region5
  $region4: #{multiscale_lstm_forward.9} parent=0 // pred_region
    _
  $region5: #{multiscale_lstm_forward.9} parent=0 // pred_fallthru
    _
  // Predicated region
  $region6: #{multiscale_lstm_forward.9} parent=0 // pred_check
    _
  $region7: #{multiscale_lstm_forward.9} parent=0 // pred_check_branch
    %11 = sbr.rel (0) target = $region9
  $region8: #{multiscale_lstm_forward.9} parent=0 // pred_region
    _
  $region9: #{multiscale_lstm_forward.9} parent=0 // pred_fallthru
    _
  // Predicated region
  $region10: #{multiscale_lstm_forward.9} parent=0 // pred_check
    _
  $region11: #{multiscale_lstm_forward.9} parent=0 // pred_check_branch
    %13 = sbr.rel (0) target = $region13
  $region12: #{multiscale_lstm_forward.9} parent=0 // pred_region
    _
  $region13: #{multiscale_lstm_forward.9} parent=0 // pred_fallthru
    _
  %v14 = vld [vmem:[%s0] sm:$0xff]
  %v15 = vld [vmem:[%s0 + $0x8] sm:$0xff]
  %v16 = vld [vmem:[%s1] sm:$0xff]
  %v17 = vld [vmem:[%s1 + $0x8] sm:$0xff]
  %v18 = vld [vmem:[%s1 + $0x10] sm:$0xff]
  %v19 = vld [vmem:[%s1 + $0x18] sm:$0xff]
  %v20 = vld [vmem:[%s2] sm:$0x1]
  %v22 = vperm.slane %v20, 0
  %vm24 = vcmask 261120
  %v26 = vsel %vm24, %v14, 0
  %v29 = vsel %vm24, %v15, 0
  %31 = vmatpush.msra.mxu0 0.0
  %32 = vmatpush.msra.mxu0 0.0
  %33 = vmatpush.msra.mxu0 0.0
  %34 = vmatpush.msra.mxu0 0.0
  %35 = vmatpush.msra.mxu0 0.0
  %36 = vmatpush.msra.mxu0 0.0
  %37 = vmatpush.msra.mxu0 0.0
  %38 = vmatpush.msra.mxu0 0.0
  %39 = vmatpush.msra.mxu0 0.0
  %40 = vmatpush.msra.mxu0 0.0
  %41 = vmatpush.msra.mxu0 0.0
  %42 = vmatpush.msra.mxu0 0.0
  %43 = vmatpush.msra.mxu0 %v19
  %44 = vmatpush.msra.mxu0 %v18
  %45 = vmatpush.msra.mxu0 %v17
  %46 = vmatpush.msra.mxu0 %v16
  %47 = vmatmul.f32.gmra.mxu0 %v26
  %v48 = vpop.f32.mrf.mxu0
  %v49 = vadd.f32 %v22, %v48
  %50 = vmatmul.f32.gmra.mxu0 %v29
  %v51 = vpop.f32.mrf.mxu0
  %v52 = vadd.f32 %v22, %v51
  %53 = vdwg.mxu0
  %54 = vst [vmem:[%s3] sm:$0xff] %v49
  %55 = vst [vmem:[%s3 + $0x8] sm:$0xff] %v52
  // Predicated region
  $region14: #{multiscale_lstm_forward.9} parent=0 // pred_check
    _
  $region15: #{multiscale_lstm_forward.9} parent=0 // pred_check_branch
    %57 = sbr.rel (0) target = $region17
  $region16: #{multiscale_lstm_forward.9} parent=0 // pred_region
    _
  $region17: #{multiscale_lstm_forward.9} parent=0 // pred_fallthru
    _
  // Predicated region
  $region18: #{multiscale_lstm_forward.9} parent=0 // pred_check
    _
  $region19: #{multiscale_lstm_forward.9} parent=0 // pred_check_branch
    %59 = sbr.rel (0) target = $region21
  $region20: #{multiscale_lstm_forward.9} parent=0 // pred_region
    _
  $region21: #{multiscale_lstm_forward.9} parent=0 // pred_fallthru
    _

// kernel: multiscale_lstm_forward.13
$region0: #{multiscale_lstm_forward.13}
  #allocation0 [shape = 'u32[]', space=smem, size = 0x4, offset = 0x4, fixed_abs, tag = 'smem constant byte address 0x4 - core index']
  #allocation1 [shape = 'u32[72,128]{1,0:T(1,128)}', space=vmem, size = 0x9000, scoped, tag = 'internal scratch']
  %s0 = inlined_call_operand.vmem [shape: f32[16,32], index: 0, kind: input, shape index: {}]
  %s1 = inlined_call_operand.vmem [shape: f32[16,16], index: 1, kind: input, shape index: {}]
  %s2 = inlined_call_operand.vmem [shape: f32[32,32], index: 2, kind: input, shape index: {}]
  %s3 = inlined_call_operand.vmem [shape: f32[16,32], index: 3, kind: input, shape index: {}]
  %s4 = inlined_call_operand.vmem [shape: f32[1,32], index: 4, kind: input, shape index: {}]
  %s5 = inlined_call_operand.hbm [shape: f32[16,32], index: 5, kind: output, shape index: {}]
  %s6 = sld [smem:[#allocation0]]
  $region30: #{multiscale_lstm_forward.13} parent=0
    _
  %s8 = ssub.s32 1, %s6
  %s9 = scalar_select 0, %s8, %s6
  $region1: #{multiscale_lstm_forward.13} parent=0
    #allocation2 [shape = 'u8[8192]{0}', space=vmem, size = 0x2000, scoped, tag = 'output window, operand 0, single buffered']
    #allocation3 [shape = 's32[1]{0}', space=sflag, size = 0x4, scoped, tag = 'scoped memory for multiscale_lstm_forward.13']
    %10 = vsyncpa [#allocation3], 0
    // Predicated region
    $region2: #{multiscale_lstm_forward.13} parent=1 // pred_check
      _
    $region3: #{multiscale_lstm_forward.13} parent=1 // pred_check_branch
      %12 = sbr.rel (0) target = $region5
    $region4: #{multiscale_lstm_forward.13} parent=1 // pred_region
      _
    $region5: #{multiscale_lstm_forward.13} parent=1 // pred_fallthru
      _
    // Predicated region
    $region6: #{multiscale_lstm_forward.13} parent=1 // pred_check
      _
    $region7: #{multiscale_lstm_forward.13} parent=1 // pred_check_branch
      %14 = sbr.rel (0) target = $region9
    $region8: #{multiscale_lstm_forward.13} parent=1 // pred_region
      _
    $region9: #{multiscale_lstm_forward.13} parent=1 // pred_fallthru
      _
    // Predicated region
    $region10: #{multiscale_lstm_forward.13} parent=1 // pred_check
      _
    $region11: #{multiscale_lstm_forward.13} parent=1 // pred_check_branch
      %16 = sbr.rel (0) target = $region13
    $region12: #{multiscale_lstm_forward.13} parent=1 // pred_region
      _
    $region13: #{multiscale_lstm_forward.13} parent=1 // pred_fallthru
      _
    // Predicated region
    $region14: #{multiscale_lstm_forward.13} parent=1 // pred_check
      _
    $region15: #{multiscale_lstm_forward.13} parent=1 // pred_check_branch
      %18 = sbr.rel (0) target = $region17
    $region16: #{multiscale_lstm_forward.13} parent=1 // pred_region
      _
    $region17: #{multiscale_lstm_forward.13} parent=1 // pred_fallthru
      _
    // Predicated region
    $region18: #{multiscale_lstm_forward.13} parent=1 // pred_check
      _
    $region19: #{multiscale_lstm_forward.13} parent=1 // pred_check_branch
      %20 = sbr.rel (0) target = $region21
    $region20: #{multiscale_lstm_forward.13} parent=1 // pred_region
      _
    $region21: #{multiscale_lstm_forward.13} parent=1 // pred_fallthru
      _
    %v21 = vld [vmem:[%s0] sm:$0xff]
    %v22 = vld [vmem:[%s0 + $0x8] sm:$0xff]
    %v23 = vld [vmem:[%s2] sm:$0xff]
    %v24 = vld [vmem:[%s2 + $0x8] sm:$0xff]
    %v25 = vld [vmem:[%s2 + $0x10] sm:$0xff]
    %v26 = vld [vmem:[%s2 + $0x18] sm:$0xff]
    %v27 = vld [vmem:[%s1] sm:$0xff]
    %v28 = vld [vmem:[%s1 + $0x8] sm:$0xff]
    %v29 = vld [vmem:[%s3] sm:$0xff]
    %v30 = vld [vmem:[%s3 + $0x8] sm:$0xff]
    %vm31 = vcmask 130048
    %v33 = vsel %vm31, %v27, 0
    %v36 = vsel %vm31, %v28, 0
    %38 = vmatpush.msra.mxu0 0.0
    %39 = vmatpush.msra.mxu0 0.0
    %40 = vmatpush.msra.mxu0 0.0
    %41 = vmatpush.msra.mxu0 0.0
    %42 = vmatpush.msra.mxu0 0.0
    %43 = vmatpush.msra.mxu0 0.0
    %44 = vmatpush.msra.mxu0 0.0
    %45 = vmatpush.msra.mxu0 0.0
    %46 = vmatpush.msra.mxu0 0.0
    %47 = vmatpush.msra.mxu0 0.0
    %48 = vmatpush.msra.mxu0 0.0
    %49 = vmatpush.msra.mxu0 0.0
    %50 = vmatpush.msra.mxu0 0.0
    %51 = vmatpush.msra.mxu0 0.0
    %52 = vmatpush.msra.mxu0 %v30
    %53 = vmatpush.msra.mxu0 %v29
    %54 = vmatmul.f32.gmra.mxu0 %v33
    %v55 = vpop.f32.mrf.mxu0
    %v56 = vadd.f32 0.0, %v55
    %57 = vmatmul.f32.gmra.mxu0 %v36
    %v58 = vpop.f32.mrf.mxu0
    %v59 = vadd.f32 0.0, %v58
    %60 = vdwg.mxu0
    %vm61 = vcmask 261120
    %v63 = vsel %vm61, %v21, 0
    %v66 = vsel %vm61, %v22, 0
    %68 = vmatpush.msra.mxu0 0.0
    %69 = vmatpush.msra.mxu0 0.0
    %70 = vmatpush.msra.mxu0 0.0
    %71 = vmatpush.msra.mxu0 0.0
    %72 = vmatpush.msra.mxu0 0.0
    %73 = vmatpush.msra.mxu0 0.0
    %74 = vmatpush.msra.mxu0 0.0
    %75 = vmatpush.msra.mxu0 0.0
    %76 = vmatpush.msra.mxu0 0.0
    %77 = vmatpush.msra.mxu0 0.0
    %78 = vmatpush.msra.mxu0 0.0
    %79 = vmatpush.msra.mxu0 0.0
    %80 = vmatpush.msra.mxu0 %v26
    %81 = vmatpush.msra.mxu0 %v25
    %82 = vmatpush.msra.mxu0 %v24
    %83 = vmatpush.msra.mxu0 %v23
    %84 = vmatmul.f32.gmra.mxu0 %v63
    %v85 = vpop.f32.mrf.mxu0
    %v86 = vadd.f32 %v56, %v85
    %87 = vmatmul.f32.gmra.mxu0 %v66
    %v88 = vpop.f32.mrf.mxu0
    %v89 = vadd.f32 %v59, %v88
    %90 = vdwg.mxu0
    %v91 = vld [vmem:[%s4] sm:$0x1]
    %v93 = vperm.slane %v91, 0
    %v95 = vadd.f32 %v86, %v93
    %v96 = vadd.f32 %v89, %v93
    %97 = vst.msk [vmem:[#allocation2] sm:$0xff] %vm61, %v95
    %98 = vst.msk [vmem:[#allocation2 + $0x8] sm:$0xff] %vm61, %v96
    // Predicated region
    $region22: #{multiscale_lstm_forward.13} parent=1 // pred_check
      _
    $region23: #{multiscale_lstm_forward.13} parent=1 // pred_check_branch
      %100 = sbr.rel (0) target = $region25
    $region24: #{multiscale_lstm_forward.13} parent=1 // pred_region
      %102 = vsyncadd [#allocation3], 0
      %s103 = sshll.u32 [#allocation2], 4
      %s104 = int_to_ptr.vmem [resolvable:$true] %s103
      %s105 = sshll.u32 %s5, 4
      %s106 = int_to_ptr.hbm [resolvable:$true] %s105
      %111 = dma.vmem_to_hbm [thread:$0]  %s104, 256, %s106, [#allocation3], 128, 128, 8
    $region25: #{multiscale_lstm_forward.13} parent=1 // pred_fallthru
      _
    // Predicated region
    $region26: #{multiscale_lstm_forward.13} parent=1 // pred_check
      _
    $region27: #{multiscale_lstm_forward.13} parent=1 // pred_check_branch
      %113 = sbr.rel (0) target = $region29
    $region28: #{multiscale_lstm_forward.13} parent=1 // pred_region
      %115 = dma.done [#allocation3], 256
    $region29: #{multiscale_lstm_forward.13} parent=1 // pred_fallthru
      _
    %116 = vsyncpa [#allocation3], 1

</llo_original>
